<compile_context>
chip_gen: v5e
topology: v5e:2x2
jax: 0.10.0
libtpu: 0.0.40
codegen_flags: <defaults>
</compile_context>

<pallas_src>
import functools

import jax
import jax.numpy as jnp
from jax import lax
from jax.experimental import pallas as pl
from jax.experimental.pallas import tpu as pltpu

EPS_DEFAULT = 1e-5   # torch nn.LayerNorm default (norm1, normk, norm2)
EPS_FFN = 1e-6       # config.layer_norm_eps (ffn_ln)


def _layernorm(x, g, b, eps):
    x = x.astype(jnp.float32)
    mu = jnp.mean(x, axis=-1, keepdims=True)
    var = jnp.mean(jnp.square(x - mu), axis=-1, keepdims=True)
    return (x - mu) * lax.rsqrt(var + eps) * g + b


def ureader_layer_kernel(
    hid_ref, enc_ref, mask_ref,
    g1_ref, b1_ref, gk_ref, bkn_ref,
    wq_ref, bq_ref, wk_ref, bk_ref, wv_ref, bv_ref,
    wo_ref, bo_ref, g2_ref, b2_ref,
    w1_ref, bw1_ref, w3_ref, bw3_ref, gf_ref, bf_ref, w2_ref, bw2_ref,
    out_ref, *, num_heads):
    Bb, Q, H = hid_ref.shape
    S = enc_ref.shape[1]
    L = Q + S
    nh = num_heads
    d = H // nh
    scale = 1.0 / (d ** 0.5)
    bf16 = jnp.bfloat16

    # ---- LayerNorms: bf16 activations upcast, f32 math on the VPU. ----
    hid = hid_ref[...].astype(jnp.float32).reshape(Bb * Q, H)
    enc = enc_ref[...].astype(jnp.float32).reshape(Bb * S, H)
    q_n = _layernorm(hid, g1_ref[...], b1_ref[...], EPS_DEFAULT)     # [Bb*Q, H] f32
    e_n = _layernorm(enc, gk_ref[...], bkn_ref[...], EPS_DEFAULT)    # [Bb*S, H] f32
    q_n_bf = q_n.astype(bf16)

    # Key/value input = [normed query tokens ; normed encoder tokens] along the
    # sequence axis (matches torch.cat in the module).  Concat in f32 (sublane
    # aligned for Q % 8 == 0), single cast to bf16 afterwards.
    kv_in = jnp.concatenate(
        [q_n.reshape(Bb, Q, H), e_n.reshape(Bb, S, H)], axis=1)      # [Bb, L, H] f32
    kv_in = kv_in.reshape(Bb * L, H).astype(bf16)

    # ---- Projections: bf16 operands on the MXU, f32 accumulation. ----
    # 1/sqrt(d) folded into q (bias included) once.
    q_proj = (jnp.dot(q_n_bf, wq_ref[...], preferred_element_type=jnp.float32)
              + bq_ref[...]) * scale                                 # [Bb*Q, H] f32
    k_proj = (jnp.dot(kv_in, wk_ref[...], preferred_element_type=jnp.float32)
              + bk_ref[...])                                         # [Bb*L, H] f32
    v_proj = (jnp.dot(kv_in, wv_ref[...], preferred_element_type=jnp.float32)
              + bv_ref[...])                                         # [Bb*L, H] f32

    q3 = q_proj.reshape(Bb, Q, H).astype(bf16)
    k3 = k_proj.reshape(Bb, L, H).astype(bf16)
    v3 = v_proj.reshape(Bb, L, H).astype(bf16)

    # Additive mask broadcast hoisted out of the head loop (no per-head
    # broadcast_in_dim re-emission).
    mask_b = jnp.broadcast_to(mask_ref[...], (Bb, Q, L)).astype(jnp.float32)

    # ---- Multi-head cross attention. ----
    # Heads are looped (Mosaic's dot_general supports one batch dim and only
    # minor-dim transposes, so a fully head-batched 4-D einsum does not lower),
    # but the loop body is now a single QK^T + softmax + PV over the joint key
    # sequence, and the per-head contexts are assembled with a single lane
    # concat — no masked scratch stores, no f32 scratch round-trip.
    # TODO(synk): attention-probs dropout omitted (eval-mode identity).
    ctx_heads = []
    for h in range(nh):
        lo = h * d
        qh = q3[:, :, lo:lo + d]                                     # [Bb, Q, d] bf16
        kh = k3[:, :, lo:lo + d]                                     # [Bb, L, d] bf16
        vh = v3[:, :, lo:lo + d]                                     # [Bb, L, d] bf16
        s = jnp.einsum('bqd,bkd->bqk', qh, kh,
                       preferred_element_type=jnp.float32) + mask_b  # [Bb, Q, L] f32
        p = jnp.exp(s - jnp.max(s, axis=-1, keepdims=True))
        inv = pl.reciprocal(jnp.sum(p, axis=-1, keepdims=True), approx=True)  # EUP slot
        ctx_h = jnp.einsum('bqk,bkd->bqd', p.astype(bf16), vh,
                           preferred_element_type=jnp.float32) * inv # [Bb, Q, d] f32
        ctx_heads.append(ctx_h.reshape(Bb * Q, d))
    ctx = jnp.concatenate(ctx_heads, axis=-1).astype(bf16)           # [Bb*Q, H] bf16

    # ---- Cross output: residual (on normed query) + gated-SiLU MLP. ----
    attn_out = (jnp.dot(ctx, wo_ref[...], preferred_element_type=jnp.float32)
                + bo_ref[...])
    x = q_n + attn_out                                               # [Bb*Q, H] f32
    ln2 = _layernorm(x, g2_ref[...], b2_ref[...], EPS_DEFAULT).astype(bf16)
    h1 = (jnp.dot(ln2, w1_ref[...], preferred_element_type=jnp.float32)
          + bw1_ref[...])                                            # [Bb*Q, I] f32
    h3 = (jnp.dot(ln2, w3_ref[...], preferred_element_type=jnp.float32)
          + bw3_ref[...])                                            # [Bb*Q, I] f32
    hmid = (h1 * jax.nn.sigmoid(h1)) * h3                            # SiLU(w1) * w3
    hmid = _layernorm(hmid, gf_ref[...], bf_ref[...], EPS_FFN)
    mlp = (jnp.dot(hmid.astype(bf16), w2_ref[...], preferred_element_type=jnp.float32)
           + bw2_ref[...])                                           # [Bb*Q, H] f32

    out_ref[...] = (x + mlp).reshape(Bb, Q, H).astype(out_ref.dtype)


def _vmem_limit_bytes():
    # ~75% of physical VMEM: v5e/v6e (128 MiB) -> 96 MiB, v7x (64 MiB) -> 48 MiB.
    try:
        cap = int(pltpu.get_tpu_info().vmem_capacity_bytes)
    except Exception:
        cap = 64 * 1024 * 1024
    return min((cap * 3) // 4, 112 * 1024 * 1024)


def _pick_block_b(B, Q, S, H, I):
    """Samples per grid step: fatten the matmul M dim (block_b*Q) toward the
    256-wide MXU tile while keeping >=2 pipelined grid steps (DMA/compute
    overlap) and a per-chip VMEM budget (v7x: 64 MiB physical)."""
    if B <= 1:
        return 1
    try:
        vmem_cap = int(pltpu.get_tpu_info().vmem_capacity_bytes)
    except Exception:
        vmem_cap = 64 * 1024 * 1024
    L = Q + S
    # rough f32-equivalent per-sample working set (activations + temporaries)
    per_sample = 4 * (6 * Q * H + 4 * L * H + 2 * Q * L + 3 * Q * I)
    vmem_max = max(1, (vmem_cap // 4) // max(per_sample, 1))
    divs = [x for x in range(1, B + 1) if B % x == 0]
    cands = [x for x in divs if B // x >= 2] or [1]      # keep >=2 grid steps
    cands = [x for x in cands if x <= vmem_max] or [min(cands)]
    rich = [x for x in cands if x * Q >= 256]            # MXU-friendly M
    return min(rich) if rich else max(cands)


def ureader_abstractor_layer(hidden, encoder, mask_q, mask_e, params, *,
                             num_heads, block_b=None, out_dtype=None):
    B, Q, H = hidden.shape
    S = encoder.shape[1]
    L = Q + S
    assert H % num_heads == 0
    out_dtype = hidden.dtype if out_dtype is None else out_dtype

    # Mask concat (torch.cat([attention_mask, encoder_attention_mask], -1)) done
    # once in the wrapper — tiny [B,1,L] f32 tensor.
    mask = jnp.concatenate([mask_q, mask_e], axis=-1).astype(jnp.float32)

    I = params[14].shape[1]   # w1: [H, I]
    if block_b is None:
        block_b = _pick_block_b(B, Q, S, H, I)
    block_b = max(1, min(block_b, B))
    while B % block_b:
        block_b -= 1
    nb = B // block_b

    data_specs = [
        pl.BlockSpec((block_b, Q, H), lambda b: (b, 0, 0)),
        pl.BlockSpec((block_b, S, H), lambda b: (b, 0, 0)),
        pl.BlockSpec((block_b, 1, L), lambda b: (b, 0, 0)),
    ]
    # Weights / LN params: whole-array VMEM-resident, constant across the grid,
    # so a single copy and no per-step double-buffering.
    weight_spec = pl.BlockSpec(memory_space=pltpu.MemorySpace.VMEM)
    in_specs = data_specs + [weight_spec] * len(params)

    out = pl.pallas_call(
        functools.partial(ureader_layer_kernel, num_heads=num_heads),
        out_shape=jax.ShapeDtypeStruct((B, Q, H), out_dtype),
        grid=(nb,),
        in_specs=in_specs,
        out_specs=pl.BlockSpec((block_b, Q, H), lambda b: (b, 0, 0)),
        compiler_params=pltpu.CompilerParams(
            dimension_semantics=("parallel",),
            vmem_limit_bytes=_vmem_limit_bytes()),
    )(hidden, encoder, mask, *params)
    return out


def pack_params(p):
    """Cast weight matrices to bf16 for the kernel (biases / LN params stay f32)."""
    (g1, b1n, gk, bkn, wq, bq, wk, bk, wv, bv, wo, bo, g2, b2n,
     w1, bw1, w3, bw3, gf, bf, w2, bw2) = p
    c = lambda w: w.astype(jnp.bfloat16)
    return [g1, b1n, gk, bkn,
            c(wq), bq, c(wk), bk, c(wv), bv,
            c(wo), bo, g2, b2n,
            c(w1), bw1, c(w3), bw3, gf, bf,
            c(w2), bw2]


def reference(hidden, encoder, mask_q, mask_e, p, *, num_heads):
    """Pure-JAX f32 reference reproducing the PyTorch forward semantics."""
    (g1, b1n, gk, bkn, wq, bq, wk, bk, wv, bv, wo, bo, g2, b2n,
     w1, bw1, w3, bw3, gf, bf, w2, bw2) = p

    def ln(x, g, b, eps):
        mu = jnp.mean(x, axis=-1, keepdims=True)
        var = jnp.mean(jnp.square(x - mu), axis=-1, keepdims=True)
        return (x - mu) * lax.rsqrt(var + eps) * g + b

    q_n = ln(hidden, g1, b1n, EPS_DEFAULT)
    e_n = ln(encoder, gk, bkn, EPS_DEFAULT)
    kv = jnp.concatenate([q_n, e_n], axis=1)
    mask = jnp.concatenate([mask_q, mask_e], axis=-1)       # [B, 1, L]

    qp = q_n @ wq + bq
    kp = kv @ wk + bk
    vp = kv @ wv + bv
    B, Q, H = qp.shape
    L = kp.shape[1]
    d = H // num_heads
    qh = qp.reshape(B, Q, num_heads, d).transpose(0, 2, 1, 3)
    kh = kp.reshape(B, L, num_heads, d).transpose(0, 2, 1, 3)
    vh = vp.reshape(B, L, num_heads, d).transpose(0, 2, 1, 3)
    s = jnp.einsum('bhqd,bhkd->bhqk', qh, kh) / (d ** 0.5)
    s = s + mask[:, :, None, :]
    probs = jax.nn.softmax(s, axis=-1)
    ctx = jnp.einsum('bhqk,bhkd->bhqd', probs, vh)
    ctx = ctx.transpose(0, 2, 1, 3).reshape(B, Q, H)

    x = q_n + (ctx @ wo + bo)
    ln2 = ln(x, g2, b2n, EPS_DEFAULT)
    h1 = ln2 @ w1 + bw1
    h3 = ln2 @ w3 + bw3
    hm = jax.nn.silu(h1) * h3
    hm = ln(hm, gf, bf, EPS_FFN)
    return x + (hm @ w2 + bw2)


def make_params(key, H, I):
    ks = jax.random.split(key, 24)
    n = lambda k, shape, s=0.02: (s * jax.random.normal(k, shape)).astype(jnp.float32)
    params = [
        1.0 + n(ks[0], (1, H), 0.1),   # norm1 gamma
        n(ks[1], (1, H), 0.1),         # norm1 beta
        1.0 + n(ks[2], (1, H), 0.1),   # normk gamma
        n(ks[3], (1, H), 0.1),         # normk beta
        n(ks[4], (H, H)),  n(ks[5], (1, H), 0.01),   # query W, b
        n(ks[6], (H, H)),  n(ks[7], (1, H), 0.01),   # key   W, b
        n(ks[8], (H, H)),  n(ks[9], (1, H), 0.01),   # value W, b
        n(ks[10], (H, H)), n(ks[11], (1, H), 0.01),  # out_proj W, b
        1.0 + n(ks[12], (1, H), 0.1),  # norm2 gamma
        n(ks[13], (1, H), 0.1),        # norm2 beta
        n(ks[14], (H, I)), n(ks[15], (1, I), 0.01),  # mlp.w1 W, b
        n(ks[16], (H, I)), n(ks[17], (1, I), 0.01),  # mlp.w3 W, b
        1.0 + n(ks[18], (1, I), 0.1),  # ffn_ln gamma
        n(ks[19], (1, I), 0.1),        # ffn_ln beta
        n(ks[20], (I, H)), n(ks[21], (1, H), 0.01),  # mlp.w2 W, b
    ]
    return params


if __name__ == "__main__":
    B, Q, S, H, I = 4, 8, 16, 32, 64
    NUM_HEADS = 4

    key = jax.random.PRNGKey(0)
    k_h, k_e, k_p = jax.random.split(key, 3)
    hidden = jax.random.normal(k_h, (B, Q, H), dtype=jnp.float32)
    encoder = jax.random.normal(k_e, (B, S, H), dtype=jnp.float32)

    # additive attention masks (0 = attend, -1e4 = masked); exercise both the
    # query-tokens-as-keys segment and the encoder segment.
    mask_q = jnp.zeros((B, 1, Q), dtype=jnp.float32)
    mask_e = jnp.zeros((B, 1, S), dtype=jnp.float32)
    mask_q = mask_q.at[2, 0, -2:].set(-1e4)
    mask_e = mask_e.at[1, 0, -3:].set(-1e4)
    mask_e = mask_e.at[3, 0, -5:].set(-1e4)

    params = make_params(k_p, H, I)           # f32, torch layout
    kparams = pack_params(params)             # bf16 weights for the kernel

    # Activations travel as bf16 (halves the per-step DMA / double buffers).
    hidden_bf = hidden.astype(jnp.bfloat16)
    encoder_bf = encoder.astype(jnp.bfloat16)

    out = ureader_abstractor_layer(hidden_bf, encoder_bf, mask_q, mask_e, kparams,
                                   num_heads=NUM_HEADS, out_dtype=jnp.float32)
    out = jax.block_until_ready(out)

    # Reference in f32 math on the same bf16-rounded activations.
    ref = reference(hidden_bf.astype(jnp.float32), encoder_bf.astype(jnp.float32),
                    mask_q, mask_e, params, num_heads=NUM_HEADS)
    assert out.shape == (B, Q, H)
    err = float(jnp.max(jnp.abs(out - ref)))
    # bf16 MXU operands + approx reciprocal => looser tolerance than pure f32.
    assert err < 5e-2, err

    print("KERNEL_OK")
</pallas_src>

<mosaic_0001>
module attributes {stable_mosaic.version = 11 : i64} {
  func.func @ureader_layer_kernel(%arg0: i32, %arg1: memref<2x8x32xbf16, #tpu.memory_space<vmem>>, %arg2: memref<2x16x32xbf16, #tpu.memory_space<vmem>>, %arg3: memref<2x1x24xf32, #tpu.memory_space<vmem>>, %arg4: memref<1x32xf32, #tpu.memory_space<vmem>>, %arg5: memref<1x32xf32, #tpu.memory_space<vmem>>, %arg6: memref<1x32xf32, #tpu.memory_space<vmem>>, %arg7: memref<1x32xf32, #tpu.memory_space<vmem>>, %arg8: memref<32x32xbf16, #tpu.memory_space<vmem>>, %arg9: memref<1x32xf32, #tpu.memory_space<vmem>>, %arg10: memref<32x32xbf16, #tpu.memory_space<vmem>>, %arg11: memref<1x32xf32, #tpu.memory_space<vmem>>, %arg12: memref<32x32xbf16, #tpu.memory_space<vmem>>, %arg13: memref<1x32xf32, #tpu.memory_space<vmem>>, %arg14: memref<32x32xbf16, #tpu.memory_space<vmem>>, %arg15: memref<1x32xf32, #tpu.memory_space<vmem>>, %arg16: memref<1x32xf32, #tpu.memory_space<vmem>>, %arg17: memref<1x32xf32, #tpu.memory_space<vmem>>, %arg18: memref<32x64xbf16, #tpu.memory_space<vmem>>, %arg19: memref<1x64xf32, #tpu.memory_space<vmem>>, %arg20: memref<32x64xbf16, #tpu.memory_space<vmem>>, %arg21: memref<1x64xf32, #tpu.memory_space<vmem>>, %arg22: memref<1x64xf32, #tpu.memory_space<vmem>>, %arg23: memref<1x64xf32, #tpu.memory_space<vmem>>, %arg24: memref<64x32xbf16, #tpu.memory_space<vmem>>, %arg25: memref<1x32xf32, #tpu.memory_space<vmem>>, %arg26: memref<2x8x32xf32, #tpu.memory_space<vmem>>) attributes {dimension_semantics = [#tpu.dimension_semantics<parallel>], iteration_bounds = array<i64: 2>, scalar_prefetch = 0 : i64, scratch_operands = 0 : i64, tpu.core_type = #tpu.core_type<tc>, window_params = [{transform_indices = @transform_0, window_bounds = array<i64: 2, 8, 32>}, {transform_indices = @transform_1, window_bounds = array<i64: 2, 16, 32>}, {transform_indices = @transform_2, window_bounds = array<i64: 2, 1, 24>}, {pipeline_mode = #tpu.pipeline_mode<synchronous>, transform_indices = @transform_3, window_bounds = array<i64: 1, 32>}, {pipeline_mode = #tpu.pipeline_mode<synchronous>, transform_indices = @transform_4, window_bounds = array<i64: 1, 32>}, {pipeline_mode = #tpu.pipeline_mode<synchronous>, transform_indices = @transform_5, window_bounds = array<i64: 1, 32>}, {pipeline_mode = #tpu.pipeline_mode<synchronous>, transform_indices = @transform_6, window_bounds = array<i64: 1, 32>}, {pipeline_mode = #tpu.pipeline_mode<synchronous>, transform_indices = @transform_7, window_bounds = array<i64: 32, 32>}, {pipeline_mode = #tpu.pipeline_mode<synchronous>, transform_indices = @transform_8, window_bounds = array<i64: 1, 32>}, {pipeline_mode = #tpu.pipeline_mode<synchronous>, transform_indices = @transform_9, window_bounds = array<i64: 32, 32>}, {pipeline_mode = #tpu.pipeline_mode<synchronous>, transform_indices = @transform_10, window_bounds = array<i64: 1, 32>}, {pipeline_mode = #tpu.pipeline_mode<synchronous>, transform_indices = @transform_11, window_bounds = array<i64: 32, 32>}, {pipeline_mode = #tpu.pipeline_mode<synchronous>, transform_indices = @transform_12, window_bounds = array<i64: 1, 32>}, {pipeline_mode = #tpu.pipeline_mode<synchronous>, transform_indices = @transform_13, window_bounds = array<i64: 32, 32>}, {pipeline_mode = #tpu.pipeline_mode<synchronous>, transform_indices = @transform_14, window_bounds = array<i64: 1, 32>}, {pipeline_mode = #tpu.pipeline_mode<synchronous>, transform_indices = @transform_15, window_bounds = array<i64: 1, 32>}, {pipeline_mode = #tpu.pipeline_mode<synchronous>, transform_indices = @transform_16, window_bounds = array<i64: 1, 32>}, {pipeline_mode = #tpu.pipeline_mode<synchronous>, transform_indices = @transform_17, window_bounds = array<i64: 32, 64>}, {pipeline_mode = #tpu.pipeline_mode<synchronous>, transform_indices = @transform_18, window_bounds = array<i64: 1, 64>}, {pipeline_mode = #tpu.pipeline_mode<synchronous>, transform_indices = @transform_19, window_bounds = array<i64: 32, 64>}, {pipeline_mode = #tpu.pipeline_mode<synchronous>, transform_indices = @transform_20, window_bounds = array<i64: 1, 64>}, {pipeline_mode = #tpu.pipeline_mode<synchronous>, transform_indices = @transform_21, window_bounds = array<i64: 1, 64>}, {pipeline_mode = #tpu.pipeline_mode<synchronous>, transform_indices = @transform_22, window_bounds = array<i64: 1, 64>}, {pipeline_mode = #tpu.pipeline_mode<synchronous>, transform_indices = @transform_23, window_bounds = array<i64: 64, 32>}, {pipeline_mode = #tpu.pipeline_mode<synchronous>, transform_indices = @transform_24, window_bounds = array<i64: 1, 32>}, {transform_indices = @transform_25, window_bounds = array<i64: 2, 8, 32>}]} {
    %c0 = arith.constant 0 : index
    %c0_0 = arith.constant 0 : index
    %c0_1 = arith.constant 0 : index
    %0 = vector.load %arg1[%c0, %c0_0, %c0_1] : memref<2x8x32xbf16, #tpu.memory_space<vmem>>, vector<2x8x32xbf16>
    %1 = arith.extf %0 : vector<2x8x32xbf16> to vector<2x8x32xf32>
    %2 = vector.shape_cast %1 : vector<2x8x32xf32> to vector<16x32xf32>
    %c0_2 = arith.constant 0 : index
    %c0_3 = arith.constant 0 : index
    %c0_4 = arith.constant 0 : index
    %3 = vector.load %arg2[%c0_2, %c0_3, %c0_4] : memref<2x16x32xbf16, #tpu.memory_space<vmem>>, vector<2x16x32xbf16>
    %4 = arith.extf %3 : vector<2x16x32xbf16> to vector<2x16x32xf32>
    %5 = vector.shape_cast %4 : vector<2x16x32xf32> to vector<32x32xf32>
    %c0_5 = arith.constant 0 : index
    %c0_6 = arith.constant 0 : index
    %6 = vector.load %arg4[%c0_5, %c0_6] : memref<1x32xf32, #tpu.memory_space<vmem>>, vector<1x32xf32>
    %c0_7 = arith.constant 0 : index
    %c0_8 = arith.constant 0 : index
    %7 = vector.load %arg5[%c0_7, %c0_8] : memref<1x32xf32, #tpu.memory_space<vmem>>, vector<1x32xf32>
    %cst = arith.constant dense<0.000000e+00> : vector<16xf32>
    %8 = vector.multi_reduction <add>, %2, %cst [1] : vector<16x32xf32> to vector<16xf32>
    %9 = vector.shape_cast %8 : vector<16xf32> to vector<16x1xf32>
    %cst_9 = arith.constant 3.200000e+01 : f32
    %10 = vector.broadcast %cst_9 : f32 to vector<16x1xf32>
    %11 = arith.divf %9, %10 : vector<16x1xf32>
    %12 = vector.broadcast %11 : vector<16x1xf32> to vector<16x32xf32>
    %13 = arith.subf %2, %12 : vector<16x32xf32>
    %14 = arith.mulf %13, %13 : vector<16x32xf32>
    %cst_10 = arith.constant dense<0.000000e+00> : vector<16xf32>
    %15 = vector.multi_reduction <add>, %14, %cst_10 [1] : vector<16x32xf32> to vector<16xf32>
    %16 = vector.shape_cast %15 : vector<16xf32> to vector<16x1xf32>
    %cst_11 = arith.constant 3.200000e+01 : f32
    %17 = vector.broadcast %cst_11 : f32 to vector<16x1xf32>
    %18 = arith.divf %16, %17 : vector<16x1xf32>
    %19 = vector.broadcast %11 : vector<16x1xf32> to vector<16x32xf32>
    %20 = arith.subf %2, %19 : vector<16x32xf32>
    %cst_12 = arith.constant 9.99999974E-6 : f32
    %21 = vector.broadcast %cst_12 : f32 to vector<16x1xf32>
    %22 = arith.addf %18, %21 : vector<16x1xf32>
    %23 = math.rsqrt %22 : vector<16x1xf32>
    %24 = vector.broadcast %23 : vector<16x1xf32> to vector<16x32xf32>
    %25 = arith.mulf %20, %24 : vector<16x32xf32>
    %26 = vector.broadcast %6 : vector<1x32xf32> to vector<16x32xf32>
    %27 = arith.mulf %25, %26 : vector<16x32xf32>
    %28 = vector.broadcast %7 : vector<1x32xf32> to vector<16x32xf32>
    %29 = arith.addf %27, %28 : vector<16x32xf32>
    %c0_13 = arith.constant 0 : index
    %c0_14 = arith.constant 0 : index
    %30 = vector.load %arg6[%c0_13, %c0_14] : memref<1x32xf32, #tpu.memory_space<vmem>>, vector<1x32xf32>
    %c0_15 = arith.constant 0 : index
    %c0_16 = arith.constant 0 : index
    %31 = vector.load %arg7[%c0_15, %c0_16] : memref<1x32xf32, #tpu.memory_space<vmem>>, vector<1x32xf32>
    %cst_17 = arith.constant dense<0.000000e+00> : vector<32xf32>
    %32 = vector.multi_reduction <add>, %5, %cst_17 [1] : vector<32x32xf32> to vector<32xf32>
    %33 = vector.shape_cast %32 : vector<32xf32> to vector<32x1xf32>
    %cst_18 = arith.constant 3.200000e+01 : f32
    %34 = vector.broadcast %cst_18 : f32 to vector<32x1xf32>
    %35 = arith.divf %33, %34 : vector<32x1xf32>
    %36 = vector.broadcast %35 : vector<32x1xf32> to vector<32x32xf32>
    %37 = arith.subf %5, %36 : vector<32x32xf32>
    %38 = arith.mulf %37, %37 : vector<32x32xf32>
    %cst_19 = arith.constant dense<0.000000e+00> : vector<32xf32>
    %39 = vector.multi_reduction <add>, %38, %cst_19 [1] : vector<32x32xf32> to vector<32xf32>
    %40 = vector.shape_cast %39 : vector<32xf32> to vector<32x1xf32>
    %cst_20 = arith.constant 3.200000e+01 : f32
    %41 = vector.broadcast %cst_20 : f32 to vector<32x1xf32>
    %42 = arith.divf %40, %41 : vector<32x1xf32>
    %43 = vector.broadcast %35 : vector<32x1xf32> to vector<32x32xf32>
    %44 = arith.subf %5, %43 : vector<32x32xf32>
    %cst_21 = arith.constant 9.99999974E-6 : f32
    %45 = vector.broadcast %cst_21 : f32 to vector<32x1xf32>
    %46 = arith.addf %42, %45 : vector<32x1xf32>
    %47 = math.rsqrt %46 : vector<32x1xf32>
    %48 = vector.broadcast %47 : vector<32x1xf32> to vector<32x32xf32>
    %49 = arith.mulf %44, %48 : vector<32x32xf32>
    %50 = vector.broadcast %30 : vector<1x32xf32> to vector<32x32xf32>
    %51 = arith.mulf %49, %50 : vector<32x32xf32>
    %52 = vector.broadcast %31 : vector<1x32xf32> to vector<32x32xf32>
    %53 = arith.addf %51, %52 : vector<32x32xf32>
    %54 = arith.truncf %29 : vector<16x32xf32> to vector<16x32xbf16>
    %55 = vector.shape_cast %29 : vector<16x32xf32> to vector<2x8x32xf32>
    %56 = vector.shape_cast %53 : vector<32x32xf32> to vector<2x16x32xf32>
    %57 = tpu.concatenate %55, %56 in 1 : vector<2x8x32xf32>, vector<2x16x32xf32> -> vector<2x24x32xf32>
    %58 = vector.shape_cast %57 : vector<2x24x32xf32> to vector<48x32xf32>
    %59 = arith.truncf %58 : vector<48x32xf32> to vector<48x32xbf16>
    %c0_22 = arith.constant 0 : index
    %c0_23 = arith.constant 0 : index
    %60 = vector.load %arg8[%c0_22, %c0_23] : memref<32x32xbf16, #tpu.memory_space<vmem>>, vector<32x32xbf16>
    %cst_24 = arith.constant dense<0.000000e+00> : vector<16x32xf32>
    %61 = tpu.matmul %54, %60, %cst_24 {dimension_numbers = #tpu.dot_dimension_numbers<[1], [0], [0], [1], [0, 0, 1, 1], [], []>} : vector<16x32xbf16>, vector<32x32xbf16>, vector<16x32xf32> -> vector<16x32xf32>
    %c0_25 = arith.constant 0 : index
    %c0_26 = arith.constant 0 : index
    %62 = vector.load %arg9[%c0_25, %c0_26] : memref<1x32xf32, #tpu.memory_space<vmem>>, vector<1x32xf32>
    %63 = vector.broadcast %62 : vector<1x32xf32> to vector<16x32xf32>
    %64 = arith.addf %61, %63 : vector<16x32xf32>
    %cst_27 = arith.constant 0.353553385 : f32
    %65 = vector.broadcast %cst_27 : f32 to vector<16x32xf32>
    %66 = arith.mulf %64, %65 : vector<16x32xf32>
    %c0_28 = arith.constant 0 : index
    %c0_29 = arith.constant 0 : index
    %67 = vector.load %arg10[%c0_28, %c0_29] : memref<32x32xbf16, #tpu.memory_space<vmem>>, vector<32x32xbf16>
    %cst_30 = arith.constant dense<0.000000e+00> : vector<48x32xf32>
    %68 = tpu.matmul %59, %67, %cst_30 {dimension_numbers = #tpu.dot_dimension_numbers<[1], [0], [0], [1], [0, 0, 1, 1], [], []>} : vector<48x32xbf16>, vector<32x32xbf16>, vector<48x32xf32> -> vector<48x32xf32>
    %c0_31 = arith.constant 0 : index
    %c0_32 = arith.constant 0 : index
    %69 = vector.load %arg11[%c0_31, %c0_32] : memref<1x32xf32, #tpu.memory_space<vmem>>, vector<1x32xf32>
    %70 = vector.broadcast %69 : vector<1x32xf32> to vector<48x32xf32>
    %71 = arith.addf %68, %70 : vector<48x32xf32>
    %c0_33 = arith.constant 0 : index
    %c0_34 = arith.constant 0 : index
    %72 = vector.load %arg12[%c0_33, %c0_34] : memref<32x32xbf16, #tpu.memory_space<vmem>>, vector<32x32xbf16>
    %cst_35 = arith.constant dense<0.000000e+00> : vector<48x32xf32>
    %73 = tpu.matmul %59, %72, %cst_35 {dimension_numbers = #tpu.dot_dimension_numbers<[1], [0], [0], [1], [0, 0, 1, 1], [], []>} : vector<48x32xbf16>, vector<32x32xbf16>, vector<48x32xf32> -> vector<48x32xf32>
    %c0_36 = arith.constant 0 : index
    %c0_37 = arith.constant 0 : index
    %74 = vector.load %arg13[%c0_36, %c0_37] : memref<1x32xf32, #tpu.memory_space<vmem>>, vector<1x32xf32>
    %75 = vector.broadcast %74 : vector<1x32xf32> to vector<48x32xf32>
    %76 = arith.addf %73, %75 : vector<48x32xf32>
    %77 = vector.shape_cast %66 : vector<16x32xf32> to vector<2x8x32xf32>
    %78 = arith.truncf %77 : vector<2x8x32xf32> to vector<2x8x32xbf16>
    %79 = vector.shape_cast %71 : vector<48x32xf32> to vector<2x24x32xf32>
    %80 = arith.truncf %79 : vector<2x24x32xf32> to vector<2x24x32xbf16>
    %81 = vector.shape_cast %76 : vector<48x32xf32> to vector<2x24x32xf32>
    %82 = arith.truncf %81 : vector<2x24x32xf32> to vector<2x24x32xbf16>
    %c0_38 = arith.constant 0 : index
    %c0_39 = arith.constant 0 : index
    %c0_40 = arith.constant 0 : index
    %83 = vector.load %arg3[%c0_38, %c0_39, %c0_40] : memref<2x1x24xf32, #tpu.memory_space<vmem>>, vector<2x1x24xf32>
    %84 = vector.shape_cast %83 : vector<2x1x24xf32> to vector<2x1x24xf32>
    %85 = vector.broadcast %84 : vector<2x1x24xf32> to vector<2x8x24xf32>
    %86 = vector.extract_strided_slice %78 {offsets = [0, 0, 0], sizes = [2, 8, 8], strides = [1, 1, 1]} : vector<2x8x32xbf16> to vector<2x8x8xbf16>
    %87 = vector.extract_strided_slice %80 {offsets = [0, 0, 0], sizes = [2, 24, 8], strides = [1, 1, 1]} : vector<2x24x32xbf16> to vector<2x24x8xbf16>
    %88 = vector.extract_strided_slice %82 {offsets = [0, 0, 0], sizes = [2, 24, 8], strides = [1, 1, 1]} : vector<2x24x32xbf16> to vector<2x24x8xbf16>
    "tpu.trace_start"() <{level = 10 : i32, message = "bqd,bkd->bqk"}> : () -> ()
    %cst_41 = arith.constant dense<0.000000e+00> : vector<2x8x24xf32>
    %89 = tpu.matmul %86, %87, %cst_41 {dimension_numbers = #tpu.dot_dimension_numbers<[2], [2], [1], [1], [0, 0, 0, 1, 1, 1], [0], [0]>} : vector<2x8x8xbf16>, vector<2x24x8xbf16>, vector<2x8x24xf32> -> vector<2x8x24xf32>
    "tpu.trace_stop"() : () -> ()
    %90 = arith.addf %89, %85 : vector<2x8x24xf32>
    %cst_42 = arith.constant dense<0xFF800000> : vector<2x8xf32>
    %91 = vector.multi_reduction <maximumf>, %90, %cst_42 [2] : vector<2x8x24xf32> to vector<2x8xf32>
    %92 = vector.shape_cast %91 : vector<2x8xf32> to vector<2x8x1xf32>
    %93 = vector.broadcast %92 : vector<2x8x1xf32> to vector<2x8x24xf32>
    %94 = arith.subf %90, %93 : vector<2x8x24xf32>
    %95 = math.exp %94 : vector<2x8x24xf32>
    %cst_43 = arith.constant dense<0.000000e+00> : vector<2x8xf32>
    %96 = vector.multi_reduction <add>, %95, %cst_43 [2] : vector<2x8x24xf32> to vector<2x8xf32>
    %97 = vector.shape_cast %96 : vector<2x8xf32> to vector<2x8x1xf32>
    %98 = tpu.reciprocal %97 {approx = true} : vector<2x8x1xf32> -> vector<2x8x1xf32>
    %99 = arith.truncf %95 : vector<2x8x24xf32> to vector<2x8x24xbf16>
    "tpu.trace_start"() <{level = 10 : i32, message = "bqk,bkd->bqd"}> : () -> ()
    %cst_44 = arith.constant dense<0.000000e+00> : vector<2x8x8xf32>
    %100 = tpu.matmul %99, %88, %cst_44 {dimension_numbers = #tpu.dot_dimension_numbers<[2], [1], [1], [2], [0, 0, 0, 1, 1, 2], [0], [0]>} : vector<2x8x24xbf16>, vector<2x24x8xbf16>, vector<2x8x8xf32> -> vector<2x8x8xf32>
    "tpu.trace_stop"() : () -> ()
    %101 = vector.broadcast %98 : vector<2x8x1xf32> to vector<2x8x8xf32>
    %102 = arith.mulf %100, %101 : vector<2x8x8xf32>
    %103 = vector.shape_cast %102 : vector<2x8x8xf32> to vector<16x8xf32>
    %104 = vector.extract_strided_slice %78 {offsets = [0, 0, 8], sizes = [2, 8, 8], strides = [1, 1, 1]} : vector<2x8x32xbf16> to vector<2x8x8xbf16>
    %105 = vector.extract_strided_slice %80 {offsets = [0, 0, 8], sizes = [2, 24, 8], strides = [1, 1, 1]} : vector<2x24x32xbf16> to vector<2x24x8xbf16>
    %106 = vector.extract_strided_slice %82 {offsets = [0, 0, 8], sizes = [2, 24, 8], strides = [1, 1, 1]} : vector<2x24x32xbf16> to vector<2x24x8xbf16>
    "tpu.trace_start"() <{level = 10 : i32, message = "bqd,bkd->bqk"}> : () -> ()
    %cst_45 = arith.constant dense<0.000000e+00> : vector<2x8x24xf32>
    %107 = tpu.matmul %104, %105, %cst_45 {dimension_numbers = #tpu.dot_dimension_numbers<[2], [2], [1], [1], [0, 0, 0, 1, 1, 1], [0], [0]>} : vector<2x8x8xbf16>, vector<2x24x8xbf16>, vector<2x8x24xf32> -> vector<2x8x24xf32>
    "tpu.trace_stop"() : () -> ()
    %108 = arith.addf %107, %85 : vector<2x8x24xf32>
    %cst_46 = arith.constant dense<0xFF800000> : vector<2x8xf32>
    %109 = vector.multi_reduction <maximumf>, %108, %cst_46 [2] : vector<2x8x24xf32> to vector<2x8xf32>
    %110 = vector.shape_cast %109 : vector<2x8xf32> to vector<2x8x1xf32>
    %111 = vector.broadcast %110 : vector<2x8x1xf32> to vector<2x8x24xf32>
    %112 = arith.subf %108, %111 : vector<2x8x24xf32>
    %113 = math.exp %112 : vector<2x8x24xf32>
    %cst_47 = arith.constant dense<0.000000e+00> : vector<2x8xf32>
    %114 = vector.multi_reduction <add>, %113, %cst_47 [2] : vector<2x8x24xf32> to vector<2x8xf32>
    %115 = vector.shape_cast %114 : vector<2x8xf32> to vector<2x8x1xf32>
    %116 = tpu.reciprocal %115 {approx = true} : vector<2x8x1xf32> -> vector<2x8x1xf32>
    %117 = arith.truncf %113 : vector<2x8x24xf32> to vector<2x8x24xbf16>
    "tpu.trace_start"() <{level = 10 : i32, message = "bqk,bkd->bqd"}> : () -> ()
    %cst_48 = arith.constant dense<0.000000e+00> : vector<2x8x8xf32>
    %118 = tpu.matmul %117, %106, %cst_48 {dimension_numbers = #tpu.dot_dimension_numbers<[2], [1], [1], [2], [0, 0, 0, 1, 1, 2], [0], [0]>} : vector<2x8x24xbf16>, vector<2x24x8xbf16>, vector<2x8x8xf32> -> vector<2x8x8xf32>
    "tpu.trace_stop"() : () -> ()
    %119 = vector.broadcast %116 : vector<2x8x1xf32> to vector<2x8x8xf32>
    %120 = arith.mulf %118, %119 : vector<2x8x8xf32>
    %121 = vector.shape_cast %120 : vector<2x8x8xf32> to vector<16x8xf32>
    %122 = vector.extract_strided_slice %78 {offsets = [0, 0, 16], sizes = [2, 8, 8], strides = [1, 1, 1]} : vector<2x8x32xbf16> to vector<2x8x8xbf16>
    %123 = vector.extract_strided_slice %80 {offsets = [0, 0, 16], sizes = [2, 24, 8], strides = [1, 1, 1]} : vector<2x24x32xbf16> to vector<2x24x8xbf16>
    %124 = vector.extract_strided_slice %82 {offsets = [0, 0, 16], sizes = [2, 24, 8], strides = [1, 1, 1]} : vector<2x24x32xbf16> to vector<2x24x8xbf16>
    "tpu.trace_start"() <{level = 10 : i32, message = "bqd,bkd->bqk"}> : () -> ()
    %cst_49 = arith.constant dense<0.000000e+00> : vector<2x8x24xf32>
    %125 = tpu.matmul %122, %123, %cst_49 {dimension_numbers = #tpu.dot_dimension_numbers<[2], [2], [1], [1], [0, 0, 0, 1, 1, 1], [0], [0]>} : vector<2x8x8xbf16>, vector<2x24x8xbf16>, vector<2x8x24xf32> -> vector<2x8x24xf32>
    "tpu.trace_stop"() : () -> ()
    %126 = arith.addf %125, %85 : vector<2x8x24xf32>
    %cst_50 = arith.constant dense<0xFF800000> : vector<2x8xf32>
    %127 = vector.multi_reduction <maximumf>, %126, %cst_50 [2] : vector<2x8x24xf32> to vector<2x8xf32>
    %128 = vector.shape_cast %127 : vector<2x8xf32> to vector<2x8x1xf32>
    %129 = vector.broadcast %128 : vector<2x8x1xf32> to vector<2x8x24xf32>
    %130 = arith.subf %126, %129 : vector<2x8x24xf32>
    %131 = math.exp %130 : vector<2x8x24xf32>
    %cst_51 = arith.constant dense<0.000000e+00> : vector<2x8xf32>
    %132 = vector.multi_reduction <add>, %131, %cst_51 [2] : vector<2x8x24xf32> to vector<2x8xf32>
    %133 = vector.shape_cast %132 : vector<2x8xf32> to vector<2x8x1xf32>
    %134 = tpu.reciprocal %133 {approx = true} : vector<2x8x1xf32> -> vector<2x8x1xf32>
    %135 = arith.truncf %131 : vector<2x8x24xf32> to vector<2x8x24xbf16>
    "tpu.trace_start"() <{level = 10 : i32, message = "bqk,bkd->bqd"}> : () -> ()
    %cst_52 = arith.constant dense<0.000000e+00> : vector<2x8x8xf32>
    %136 = tpu.matmul %135, %124, %cst_52 {dimension_numbers = #tpu.dot_dimension_numbers<[2], [1], [1], [2], [0, 0, 0, 1, 1, 2], [0], [0]>} : vector<2x8x24xbf16>, vector<2x24x8xbf16>, vector<2x8x8xf32> -> vector<2x8x8xf32>
    "tpu.trace_stop"() : () -> ()
    %137 = vector.broadcast %134 : vector<2x8x1xf32> to vector<2x8x8xf32>
    %138 = arith.mulf %136, %137 : vector<2x8x8xf32>
    %139 = vector.shape_cast %138 : vector<2x8x8xf32> to vector<16x8xf32>
    %140 = vector.extract_strided_slice %78 {offsets = [0, 0, 24], sizes = [2, 8, 8], strides = [1, 1, 1]} : vector<2x8x32xbf16> to vector<2x8x8xbf16>
    %141 = vector.extract_strided_slice %80 {offsets = [0, 0, 24], sizes = [2, 24, 8], strides = [1, 1, 1]} : vector<2x24x32xbf16> to vector<2x24x8xbf16>
    %142 = vector.extract_strided_slice %82 {offsets = [0, 0, 24], sizes = [2, 24, 8], strides = [1, 1, 1]} : vector<2x24x32xbf16> to vector<2x24x8xbf16>
    "tpu.trace_start"() <{level = 10 : i32, message = "bqd,bkd->bqk"}> : () -> ()
    %cst_53 = arith.constant dense<0.000000e+00> : vector<2x8x24xf32>
    %143 = tpu.matmul %140, %141, %cst_53 {dimension_numbers = #tpu.dot_dimension_numbers<[2], [2], [1], [1], [0, 0, 0, 1, 1, 1], [0], [0]>} : vector<2x8x8xbf16>, vector<2x24x8xbf16>, vector<2x8x24xf32> -> vector<2x8x24xf32>
    "tpu.trace_stop"() : () -> ()
    %144 = arith.addf %143, %85 : vector<2x8x24xf32>
    %cst_54 = arith.constant dense<0xFF800000> : vector<2x8xf32>
    %145 = vector.multi_reduction <maximumf>, %144, %cst_54 [2] : vector<2x8x24xf32> to vector<2x8xf32>
    %146 = vector.shape_cast %145 : vector<2x8xf32> to vector<2x8x1xf32>
    %147 = vector.broadcast %146 : vector<2x8x1xf32> to vector<2x8x24xf32>
    %148 = arith.subf %144, %147 : vector<2x8x24xf32>
    %149 = math.exp %148 : vector<2x8x24xf32>
    %cst_55 = arith.constant dense<0.000000e+00> : vector<2x8xf32>
    %150 = vector.multi_reduction <add>, %149, %cst_55 [2] : vector<2x8x24xf32> to vector<2x8xf32>
    %151 = vector.shape_cast %150 : vector<2x8xf32> to vector<2x8x1xf32>
    %152 = tpu.reciprocal %151 {approx = true} : vector<2x8x1xf32> -> vector<2x8x1xf32>
    %153 = arith.truncf %149 : vector<2x8x24xf32> to vector<2x8x24xbf16>
    "tpu.trace_start"() <{level = 10 : i32, message = "bqk,bkd->bqd"}> : () -> ()
    %cst_56 = arith.constant dense<0.000000e+00> : vector<2x8x8xf32>
    %154 = tpu.matmul %153, %142, %cst_56 {dimension_numbers = #tpu.dot_dimension_numbers<[2], [1], [1], [2], [0, 0, 0, 1, 1, 2], [0], [0]>} : vector<2x8x24xbf16>, vector<2x24x8xbf16>, vector<2x8x8xf32> -> vector<2x8x8xf32>
    "tpu.trace_stop"() : () -> ()
    %155 = vector.broadcast %152 : vector<2x8x1xf32> to vector<2x8x8xf32>
    %156 = arith.mulf %154, %155 : vector<2x8x8xf32>
    %157 = vector.shape_cast %156 : vector<2x8x8xf32> to vector<16x8xf32>
    %158 = tpu.concatenate %103, %121, %139, %157 in 1 : vector<16x8xf32>, vector<16x8xf32>, vector<16x8xf32>, vector<16x8xf32> -> vector<16x32xf32>
    %159 = arith.truncf %158 : vector<16x32xf32> to vector<16x32xbf16>
    %c0_57 = arith.constant 0 : index
    %c0_58 = arith.constant 0 : index
    %160 = vector.load %arg14[%c0_57, %c0_58] : memref<32x32xbf16, #tpu.memory_space<vmem>>, vector<32x32xbf16>
    %cst_59 = arith.constant dense<0.000000e+00> : vector<16x32xf32>
    %161 = tpu.matmul %159, %160, %cst_59 {dimension_numbers = #tpu.dot_dimension_numbers<[1], [0], [0], [1], [0, 0, 1, 1], [], []>} : vector<16x32xbf16>, vector<32x32xbf16>, vector<16x32xf32> -> vector<16x32xf32>
    %c0_60 = arith.constant 0 : index
    %c0_61 = arith.constant 0 : index
    %162 = vector.load %arg15[%c0_60, %c0_61] : memref<1x32xf32, #tpu.memory_space<vmem>>, vector<1x32xf32>
    %163 = vector.broadcast %162 : vector<1x32xf32> to vector<16x32xf32>
    %164 = arith.addf %161, %163 : vector<16x32xf32>
    %165 = arith.addf %29, %164 : vector<16x32xf32>
    %c0_62 = arith.constant 0 : index
    %c0_63 = arith.constant 0 : index
    %166 = vector.load %arg16[%c0_62, %c0_63] : memref<1x32xf32, #tpu.memory_space<vmem>>, vector<1x32xf32>
    %c0_64 = arith.constant 0 : index
    %c0_65 = arith.constant 0 : index
    %167 = vector.load %arg17[%c0_64, %c0_65] : memref<1x32xf32, #tpu.memory_space<vmem>>, vector<1x32xf32>
    %cst_66 = arith.constant dense<0.000000e+00> : vector<16xf32>
    %168 = vector.multi_reduction <add>, %165, %cst_66 [1] : vector<16x32xf32> to vector<16xf32>
    %169 = vector.shape_cast %168 : vector<16xf32> to vector<16x1xf32>
    %cst_67 = arith.constant 3.200000e+01 : f32
    %170 = vector.broadcast %cst_67 : f32 to vector<16x1xf32>
    %171 = arith.divf %169, %170 : vector<16x1xf32>
    %172 = vector.broadcast %171 : vector<16x1xf32> to vector<16x32xf32>
    %173 = arith.subf %165, %172 : vector<16x32xf32>
    %174 = arith.mulf %173, %173 : vector<16x32xf32>
    %cst_68 = arith.constant dense<0.000000e+00> : vector<16xf32>
    %175 = vector.multi_reduction <add>, %174, %cst_68 [1] : vector<16x32xf32> to vector<16xf32>
    %176 = vector.shape_cast %175 : vector<16xf32> to vector<16x1xf32>
    %cst_69 = arith.constant 3.200000e+01 : f32
    %177 = vector.broadcast %cst_69 : f32 to vector<16x1xf32>
    %178 = arith.divf %176, %177 : vector<16x1xf32>
    %179 = vector.broadcast %171 : vector<16x1xf32> to vector<16x32xf32>
    %180 = arith.subf %165, %179 : vector<16x32xf32>
    %cst_70 = arith.constant 9.99999974E-6 : f32
    %181 = vector.broadcast %cst_70 : f32 to vector<16x1xf32>
    %182 = arith.addf %178, %181 : vector<16x1xf32>
    %183 = math.rsqrt %182 : vector<16x1xf32>
    %184 = vector.broadcast %183 : vector<16x1xf32> to vector<16x32xf32>
    %185 = arith.mulf %180, %184 : vector<16x32xf32>
    %186 = vector.broadcast %166 : vector<1x32xf32> to vector<16x32xf32>
    %187 = arith.mulf %185, %186 : vector<16x32xf32>
    %188 = vector.broadcast %167 : vector<1x32xf32> to vector<16x32xf32>
    %189 = arith.addf %187, %188 : vector<16x32xf32>
    %190 = arith.truncf %189 : vector<16x32xf32> to vector<16x32xbf16>
    %c0_71 = arith.constant 0 : index
    %c0_72 = arith.constant 0 : index
    %191 = vector.load %arg18[%c0_71, %c0_72] : memref<32x64xbf16, #tpu.memory_space<vmem>>, vector<32x64xbf16>
    %cst_73 = arith.constant dense<0.000000e+00> : vector<16x64xf32>
    %192 = tpu.matmul %190, %191, %cst_73 {dimension_numbers = #tpu.dot_dimension_numbers<[1], [0], [0], [1], [0, 0, 1, 1], [], []>} : vector<16x32xbf16>, vector<32x64xbf16>, vector<16x64xf32> -> vector<16x64xf32>
    %c0_74 = arith.constant 0 : index
    %c0_75 = arith.constant 0 : index
    %193 = vector.load %arg19[%c0_74, %c0_75] : memref<1x64xf32, #tpu.memory_space<vmem>>, vector<1x64xf32>
    %194 = vector.broadcast %193 : vector<1x64xf32> to vector<16x64xf32>
    %195 = arith.addf %192, %194 : vector<16x64xf32>
    %c0_76 = arith.constant 0 : index
    %c0_77 = arith.constant 0 : index
    %196 = vector.load %arg20[%c0_76, %c0_77] : memref<32x64xbf16, #tpu.memory_space<vmem>>, vector<32x64xbf16>
    %cst_78 = arith.constant dense<0.000000e+00> : vector<16x64xf32>
    %197 = tpu.matmul %190, %196, %cst_78 {dimension_numbers = #tpu.dot_dimension_numbers<[1], [0], [0], [1], [0, 0, 1, 1], [], []>} : vector<16x32xbf16>, vector<32x64xbf16>, vector<16x64xf32> -> vector<16x64xf32>
    %c0_79 = arith.constant 0 : index
    %c0_80 = arith.constant 0 : index
    %198 = vector.load %arg21[%c0_79, %c0_80] : memref<1x64xf32, #tpu.memory_space<vmem>>, vector<1x64xf32>
    %199 = vector.broadcast %198 : vector<1x64xf32> to vector<16x64xf32>
    %200 = arith.addf %197, %199 : vector<16x64xf32>
    %201 = arith.negf %195 : vector<16x64xf32>
    %202 = math.exp %201 : vector<16x64xf32>
    %cst_81 = arith.constant 1.000000e+00 : f32
    %203 = vector.broadcast %cst_81 : f32 to vector<16x64xf32>
    %204 = arith.addf %203, %202 : vector<16x64xf32>
    %205 = arith.divf %203, %204 : vector<16x64xf32>
    %206 = arith.mulf %195, %205 : vector<16x64xf32>
    %207 = arith.mulf %206, %200 : vector<16x64xf32>
    %c0_82 = arith.constant 0 : index
    %c0_83 = arith.constant 0 : index
    %208 = vector.load %arg22[%c0_82, %c0_83] : memref<1x64xf32, #tpu.memory_space<vmem>>, vector<1x64xf32>
    %c0_84 = arith.constant 0 : index
    %c0_85 = arith.constant 0 : index
    %209 = vector.load %arg23[%c0_84, %c0_85] : memref<1x64xf32, #tpu.memory_space<vmem>>, vector<1x64xf32>
    %cst_86 = arith.constant dense<0.000000e+00> : vector<16xf32>
    %210 = vector.multi_reduction <add>, %207, %cst_86 [1] : vector<16x64xf32> to vector<16xf32>
    %211 = vector.shape_cast %210 : vector<16xf32> to vector<16x1xf32>
    %cst_87 = arith.constant 6.400000e+01 : f32
    %212 = vector.broadcast %cst_87 : f32 to vector<16x1xf32>
    %213 = arith.divf %211, %212 : vector<16x1xf32>
    %214 = vector.broadcast %213 : vector<16x1xf32> to vector<16x64xf32>
    %215 = arith.subf %207, %214 : vector<16x64xf32>
    %216 = arith.mulf %215, %215 : vector<16x64xf32>
    %cst_88 = arith.constant dense<0.000000e+00> : vector<16xf32>
    %217 = vector.multi_reduction <add>, %216, %cst_88 [1] : vector<16x64xf32> to vector<16xf32>
    %218 = vector.shape_cast %217 : vector<16xf32> to vector<16x1xf32>
    %cst_89 = arith.constant 6.400000e+01 : f32
    %219 = vector.broadcast %cst_89 : f32 to vector<16x1xf32>
    %220 = arith.divf %218, %219 : vector<16x1xf32>
    %221 = vector.broadcast %213 : vector<16x1xf32> to vector<16x64xf32>
    %222 = arith.subf %207, %221 : vector<16x64xf32>
    %cst_90 = arith.constant 9.99999997E-7 : f32
    %223 = vector.broadcast %cst_90 : f32 to vector<16x1xf32>
    %224 = arith.addf %220, %223 : vector<16x1xf32>
    %225 = math.rsqrt %224 : vector<16x1xf32>
    %226 = vector.broadcast %225 : vector<16x1xf32> to vector<16x64xf32>
    %227 = arith.mulf %222, %226 : vector<16x64xf32>
    %228 = vector.broadcast %208 : vector<1x64xf32> to vector<16x64xf32>
    %229 = arith.mulf %227, %228 : vector<16x64xf32>
    %230 = vector.broadcast %209 : vector<1x64xf32> to vector<16x64xf32>
    %231 = arith.addf %229, %230 : vector<16x64xf32>
    %232 = arith.truncf %231 : vector<16x64xf32> to vector<16x64xbf16>
    %c0_91 = arith.constant 0 : index
    %c0_92 = arith.constant 0 : index
    %233 = vector.load %arg24[%c0_91, %c0_92] : memref<64x32xbf16, #tpu.memory_space<vmem>>, vector<64x32xbf16>
    %cst_93 = arith.constant dense<0.000000e+00> : vector<16x32xf32>
    %234 = tpu.matmul %232, %233, %cst_93 {dimension_numbers = #tpu.dot_dimension_numbers<[1], [0], [0], [1], [0, 0, 1, 1], [], []>} : vector<16x64xbf16>, vector<64x32xbf16>, vector<16x32xf32> -> vector<16x32xf32>
    %c0_94 = arith.constant 0 : index
    %c0_95 = arith.constant 0 : index
    %235 = vector.load %arg25[%c0_94, %c0_95] : memref<1x32xf32, #tpu.memory_space<vmem>>, vector<1x32xf32>
    %236 = vector.broadcast %235 : vector<1x32xf32> to vector<16x32xf32>
    %237 = arith.addf %234, %236 : vector<16x32xf32>
    %238 = arith.addf %165, %237 : vector<16x32xf32>
    %239 = vector.shape_cast %238 : vector<16x32xf32> to vector<2x8x32xf32>
    %c0_96 = arith.constant 0 : index
    %c0_97 = arith.constant 0 : index
    %c0_98 = arith.constant 0 : index
    %240 = vector.load %arg26[%c0_96, %c0_97, %c0_98] : memref<2x8x32xf32, #tpu.memory_space<vmem>>, vector<2x8x32xf32>
    tpu.vector_store %arg26[%c0_96, %c0_97, %c0_98], %239 {strides = array<i32>} : memref<2x8x32xf32, #tpu.memory_space<vmem>>, vector<2x8x32xf32>,
    return
  }
  func.func @transform_0(%arg0: i32) -> (i32, i32, i32) {
    %c0_i32 = arith.constant 0 : i32
    %c0_i32_0 = arith.constant 0 : i32
    %c0_i32_1 = arith.constant 0 : i32
    return %arg0, %c0_i32, %c0_i32_0 : i32, i32, i32
  }
  func.func @transform_1(%arg0: i32) -> (i32, i32, i32) {
    %c0_i32 = arith.constant 0 : i32
    %c0_i32_0 = arith.constant 0 : i32
    %c0_i32_1 = arith.constant 0 : i32
    return %arg0, %c0_i32, %c0_i32_0 : i32, i32, i32
  }
  func.func @transform_2(%arg0: i32) -> (i32, i32, i32) {
    %c0_i32 = arith.constant 0 : i32
    %c0_i32_0 = arith.constant 0 : i32
    %c0_i32_1 = arith.constant 0 : i32
    return %arg0, %c0_i32, %c0_i32_0 : i32, i32, i32
  }
  func.func @transform_3(%arg0: i32) -> (i32, i32) {
    %c0_i32 = arith.constant 0 : i32
    %c0_i32_0 = arith.constant 0 : i32
    %c0_i32_1 = arith.constant 0 : i32
    return %c0_i32, %c0_i32_0 : i32, i32
  }
  func.func @transform_4(%arg0: i32) -> (i32, i32) {
    %c0_i32 = arith.constant 0 : i32
    %c0_i32_0 = arith.constant 0 : i32
    %c0_i32_1 = arith.constant 0 : i32
    return %c0_i32, %c0_i32_0 : i32, i32
  }
  func.func @transform_5(%arg0: i32) -> (i32, i32) {
    %c0_i32 = arith.constant 0 : i32
    %c0_i32_0 = arith.constant 0 : i32
    %c0_i32_1 = arith.constant 0 : i32
    return %c0_i32, %c0_i32_0 : i32, i32
  }
  func.func @transform_6(%arg0: i32) -> (i32, i32) {
    %c0_i32 = arith.constant 0 : i32
    %c0_i32_0 = arith.constant 0 : i32
    %c0_i32_1 = arith.constant 0 : i32
    return %c0_i32, %c0_i32_0 : i32, i32
  }
  func.func @transform_7(%arg0: i32) -> (i32, i32) {
    %c0_i32 = arith.constant 0 : i32
    %c0_i32_0 = arith.constant 0 : i32
    %c0_i32_1 = arith.constant 0 : i32
    return %c0_i32, %c0_i32_0 : i32, i32
  }
  func.func @transform_8(%arg0: i32) -> (i32, i32) {
    %c0_i32 = arith.constant 0 : i32
    %c0_i32_0 = arith.constant 0 : i32
    %c0_i32_1 = arith.constant 0 : i32
    return %c0_i32, %c0_i32_0 : i32, i32
  }
  func.func @transform_9(%arg0: i32) -> (i32, i32) {
    %c0_i32 = arith.constant 0 : i32
    %c0_i32_0 = arith.constant 0 : i32
    %c0_i32_1 = arith.constant 0 : i32
    return %c0_i32, %c0_i32_0 : i32, i32
  }
  func.func @transform_10(%arg0: i32) -> (i32, i32) {
    %c0_i32 = arith.constant 0 : i32
    %c0_i32_0 = arith.constant 0 : i32
    %c0_i32_1 = arith.constant 0 : i32
    return %c0_i32, %c0_i32_0 : i32, i32
  }
  func.func @transform_11(%arg0: i32) -> (i32, i32) {
    %c0_i32 = arith.constant 0 : i32
    %c0_i32_0 = arith.constant 0 : i32
    %c0_i32_1 = arith.constant 0 : i32
    return %c0_i32, %c0_i32_0 : i32, i32
  }
  func.func @transform_12(%arg0: i32) -> (i32, i32) {
    %c0_i32 = arith.constant 0 : i32
    %c0_i32_0 = arith.constant 0 : i32
    %c0_i32_1 = arith.constant 0 : i32
    return %c0_i32, %c0_i32_0 : i32, i32
  }
  func.func @transform_13(%arg0: i32) -> (i32, i32) {
    %c0_i32 = arith.constant 0 : i32
    %c0_i32_0 = arith.constant 0 : i32
    %c0_i32_1 = arith.constant 0 : i32
    return %c0_i32, %c0_i32_0 : i32, i32
  }
  func.func @transform_14(%arg0: i32) -> (i32, i32) {
    %c0_i32 = arith.constant 0 : i32
    %c0_i32_0 = arith.constant 0 : i32
    %c0_i32_1 = arith.constant 0 : i32
    return %c0_i32, %c0_i32_0 : i32, i32
  }
  func.func @transform_15(%arg0: i32) -> (i32, i32) {
    %c0_i32 = arith.constant 0 : i32
    %c0_i32_0 = arith.constant 0 : i32
    %c0_i32_1 = arith.constant 0 : i32
    return %c0_i32, %c0_i32_0 : i32, i32
  }
  func.func @transform_16(%arg0: i32) -> (i32, i32) {
    %c0_i32 = arith.constant 0 : i32
    %c0_i32_0 = arith.constant 0 : i32
    %c0_i32_1 = arith.constant 0 : i32
    return %c0_i32, %c0_i32_0 : i32, i32
  }
  func.func @transform_17(%arg0: i32) -> (i32, i32) {
    %c0_i32 = arith.constant 0 : i32
    %c0_i32_0 = arith.constant 0 : i32
    %c0_i32_1 = arith.constant 0 : i32
    return %c0_i32, %c0_i32_0 : i32, i32
  }
  func.func @transform_18(%arg0: i32) -> (i32, i32) {
    %c0_i32 = arith.constant 0 : i32
    %c0_i32_0 = arith.constant 0 : i32
    %c0_i32_1 = arith.constant 0 : i32
    return %c0_i32, %c0_i32_0 : i32, i32
  }
  func.func @transform_19(%arg0: i32) -> (i32, i32) {
    %c0_i32 = arith.constant 0 : i32
    %c0_i32_0 = arith.constant 0 : i32
    %c0_i32_1 = arith.constant 0 : i32
    return %c0_i32, %c0_i32_0 : i32, i32
  }
  func.func @transform_20(%arg0: i32) -> (i32, i32) {
    %c0_i32 = arith.constant 0 : i32
    %c0_i32_0 = arith.constant 0 : i32
    %c0_i32_1 = arith.constant 0 : i32
    return %c0_i32, %c0_i32_0 : i32, i32
  }
  func.func @transform_21(%arg0: i32) -> (i32, i32) {
    %c0_i32 = arith.constant 0 : i32
    %c0_i32_0 = arith.constant 0 : i32
    %c0_i32_1 = arith.constant 0 : i32
    return %c0_i32, %c0_i32_0 : i32, i32
  }
  func.func @transform_22(%arg0: i32) -> (i32, i32) {
    %c0_i32 = arith.constant 0 : i32
    %c0_i32_0 = arith.constant 0 : i32
    %c0_i32_1 = arith.constant 0 : i32
    return %c0_i32, %c0_i32_0 : i32, i32
  }
  func.func @transform_23(%arg0: i32) -> (i32, i32) {
    %c0_i32 = arith.constant 0 : i32
    %c0_i32_0 = arith.constant 0 : i32
    %c0_i32_1 = arith.constant 0 : i32
    return %c0_i32, %c0_i32_0 : i32, i32
  }
  func.func @transform_24(%arg0: i32) -> (i32, i32) {
    %c0_i32 = arith.constant 0 : i32
    %c0_i32_0 = arith.constant 0 : i32
    %c0_i32_1 = arith.constant 0 : i32
    return %c0_i32, %c0_i32_0 : i32, i32
  }
  func.func @transform_25(%arg0: i32) -> (i32, i32, i32) {
    %c0_i32 = arith.constant 0 : i32
    %c0_i32_0 = arith.constant 0 : i32
    %c0_i32_1 = arith.constant 0 : i32
    return %arg0, %c0_i32, %c0_i32_0 : i32, i32, i32
  }
}

</mosaic_0001>

<llo_original>
// kernel: tpu_custom_call.1
$region0: #{tpu_custom_call.1}
  #allocation0 [shape = 'u32[]', space=smem, size = 0x4, offset = 0x4, fixed_abs, tag = 'smem constant byte address 0x4 - core index']
  #allocation1 [shape = 'u32[72,128]{1,0:T(1,128)}', space=vmem, size = 0x9000, scoped, tag = 'internal scratch']
  %s0 = inlined_call_operand.vmem [shape: bf16[4,8,32], index: 0, kind: input, shape index: {}]
  %s1 = inlined_call_operand.vmem [shape: bf16[4,16,32], index: 1, kind: input, shape index: {}]
  %s2 = inlined_call_operand.hbm [shape: f32[4,1,24], index: 2, kind: input, shape index: {}]
  %s3 = inlined_call_operand.vmem [shape: f32[1,32], index: 3, kind: input, shape index: {}]
  %s4 = inlined_call_operand.vmem [shape: f32[1,32], index: 4, kind: input, shape index: {}]
  %s5 = inlined_call_operand.vmem [shape: f32[1,32], index: 5, kind: input, shape index: {}]
  %s6 = inlined_call_operand.vmem [shape: f32[1,32], index: 6, kind: input, shape index: {}]
  %s7 = inlined_call_operand.hbm [shape: bf16[32,32], index: 7, kind: input, shape index: {}]
  %s8 = inlined_call_operand.vmem [shape: f32[1,32], index: 8, kind: input, shape index: {}]
  %s9 = inlined_call_operand.hbm [shape: bf16[32,32], index: 9, kind: input, shape index: {}]
  %s10 = inlined_call_operand.vmem [shape: f32[1,32], index: 10, kind: input, shape index: {}]
  %s11 = inlined_call_operand.hbm [shape: bf16[32,32], index: 11, kind: input, shape index: {}]
  %s12 = inlined_call_operand.hbm [shape: f32[1,32], index: 12, kind: input, shape index: {}]
  %s13 = inlined_call_operand.hbm [shape: bf16[32,32], index: 13, kind: input, shape index: {}]
  %s14 = inlined_call_operand.hbm [shape: f32[1,32], index: 14, kind: input, shape index: {}]
  %s15 = inlined_call_operand.hbm [shape: f32[1,32], index: 15, kind: input, shape index: {}]
  %s16 = inlined_call_operand.hbm [shape: f32[1,32], index: 16, kind: input, shape index: {}]
  %s17 = inlined_call_operand.hbm [shape: bf16[32,64], index: 17, kind: input, shape index: {}]
  %s18 = inlined_call_operand.hbm [shape: f32[1,64], index: 18, kind: input, shape index: {}]
  %s19 = inlined_call_operand.hbm [shape: bf16[32,64], index: 19, kind: input, shape index: {}]
  %s20 = inlined_call_operand.hbm [shape: f32[1,64], index: 20, kind: input, shape index: {}]
  %s21 = inlined_call_operand.hbm [shape: f32[1,64], index: 21, kind: input, shape index: {}]
  %s22 = inlined_call_operand.hbm [shape: f32[1,64], index: 22, kind: input, shape index: {}]
  %s23 = inlined_call_operand.vmem [shape: bf16[64,32], index: 23, kind: input, shape index: {}]
  %s24 = inlined_call_operand.vmem [shape: f32[1,32], index: 24, kind: input, shape index: {}]
  %s25 = inlined_call_operand.hbm [shape: f32[4,8,32], index: 25, kind: output, shape index: {}]
  %s26 = sld [smem:[#allocation0]]
  $region193: #{tpu_custom_call.1} parent=0
    _
  %s28 = ssub.s32 1, %s26
  %s29 = scalar_select 0, %s28, %s26
  $region1: #{tpu_custom_call.1} parent=0
    #allocation2 [shape = 'u8[2048]{0}', space=vmem, size = 0x800, scoped, tag = 'input window, operand 2']
    #allocation3 [shape = 's32[2]{0}', space=sflag, size = 0x8, scoped, tag = 'scoped memory for tpu_custom_call.1']
    #allocation4 [shape = 's32[2]{0}', space=sflag, size = 0x8, scoped, tag = 'scoped memory for tpu_custom_call.1']
    #allocation5 [shape = 'u8[8192]{0}', space=vmem, size = 0x2000, scoped, tag = 'input window, operand 7, single buffered']
    #allocation6 [shape = 's32[1]{0}', space=sflag, size = 0x4, scoped, tag = 'scoped memory for tpu_custom_call.1']
    #allocation7 [shape = 'u8[8192]{0}', space=vmem, size = 0x2000, scoped, tag = 'input window, operand 9, single buffered']
    #allocation8 [shape = 'u8[8192]{0}', space=vmem, size = 0x2000, scoped, tag = 'input window, operand 11, single buffered']
    #allocation9 [shape = 's32[1]{0}', space=sflag, size = 0x4, scoped, tag = 'scoped memory for tpu_custom_call.1']
    #allocation10 [shape = 'u8[512]{0}', space=vmem, size = 0x400, scoped, tag = 'input window, operand 12, single buffered']
    #allocation11 [shape = 'u8[8192]{0}', space=vmem, size = 0x2000, scoped, tag = 'input window, operand 13, single buffered']
    #allocation12 [shape = 's32[1]{0}', space=sflag, size = 0x4, scoped, tag = 'scoped memory for tpu_custom_call.1']
    #allocation13 [shape = 'u8[512]{0}', space=vmem, size = 0x400, scoped, tag = 'input window, operand 14, single buffered']
    #allocation14 [shape = 'u8[512]{0}', space=vmem, size = 0x400, scoped, tag = 'input window, operand 15, single buffered']
    #allocation15 [shape = 's32[1]{0}', space=sflag, size = 0x4, scoped, tag = 'scoped memory for tpu_custom_call.1']
    #allocation16 [shape = 'u8[512]{0}', space=vmem, size = 0x400, scoped, tag = 'input window, operand 16, single buffered']
    #allocation17 [shape = 'u8[8192]{0}', space=vmem, size = 0x2000, scoped, tag = 'input window, operand 17, single buffered']
    #allocation18 [shape = 's32[1]{0}', space=sflag, size = 0x4, scoped, tag = 'scoped memory for tpu_custom_call.1']
    #allocation19 [shape = 'u8[512]{0}', space=vmem, size = 0x400, scoped, tag = 'input window, operand 18, single buffered']
    #allocation20 [shape = 'u8[8192]{0}', space=vmem, size = 0x2000, scoped, tag = 'input window, operand 19, single buffered']
    #allocation21 [shape = 's32[1]{0}', space=sflag, size = 0x4, scoped, tag = 'scoped memory for tpu_custom_call.1']
    #allocation22 [shape = 'u8[512]{0}', space=vmem, size = 0x400, scoped, tag = 'input window, operand 20, single buffered']
    #allocation23 [shape = 'u8[512]{0}', space=vmem, size = 0x400, scoped, tag = 'input window, operand 21, single buffered']
    #allocation24 [shape = 's32[1]{0}', space=sflag, size = 0x4, scoped, tag = 'scoped memory for tpu_custom_call.1']
    #allocation25 [shape = 'u8[512]{0}', space=vmem, size = 0x400, scoped, tag = 'input window, operand 22, single buffered']
    #allocation26 [shape = 'u8[16384]{0}', space=vmem, size = 0x4000, scoped, tag = 'output window, operand 0']
    %30 = vsyncpa [#allocation3], 0
    %s31 = scalar_lea.sflag [#allocation3], 1
    %32 = vsyncpa %s31, 0
    %33 = vsyncpa [#allocation6], 0
    %34 = vsyncpa [#allocation9], 0
    %35 = vsyncpa [#allocation12], 0
    %36 = vsyncpa [#allocation15], 0
    %37 = vsyncpa [#allocation18], 0
    %38 = vsyncpa [#allocation21], 0
    %39 = vsyncpa [#allocation24], 0
    %40 = vsyncpa [#allocation4], 0
    %s41 = scalar_lea.sflag [#allocation4], 1
    %42 = vsyncpa %s41, 0
    loop: start=0, step=1, limit=4
    $region2: #{tpu_custom_call.1} parent=1 // loop_pre_header
      _
    $region3: #{tpu_custom_call.1} parent=1 // loop_header
      %s44 = sphi 0, %s48
      %p45 = scmp.ge.s32.totalorder %s44, 4
      %s54 = sphi 0, %s56
      %s57 = sphi 0, %s54
      %s58 = sphi 0, %s57
      %s74 = sphi 0, %s58
      %s80 = sphi 0, %s82
      %s83 = sphi 0, %s80
      %s84 = sphi 0, %s83
      %s100 = sphi 0, %s84
      %s106 = sphi 0, %s108
      %s109 = sphi 0, %s106
      %s110 = sphi 0, %s109
      %s126 = sphi 0, %s110
      %s130 = sphi 0, %s130
      %s132 = sphi 0, %s130
      %s133 = sphi 0, %s132
      %s147 = sphi 0, %s133
      %s151 = sphi 0, %s151
      %s153 = sphi 0, %s151
      %s154 = sphi 0, %s153
      %s168 = sphi 0, %s154
      %s172 = sphi 0, %s172
      %s174 = sphi 0, %s172
      %s175 = sphi 0, %s174
      %s189 = sphi 0, %s175
      %s193 = sphi 0, %s193
      %s195 = sphi 0, %s193
      %s196 = sphi 0, %s195
      %s210 = sphi 0, %s196
      %s214 = sphi 0, %s214
      %s216 = sphi 0, %s214
      %s217 = sphi 0, %s216
      %s231 = sphi 0, %s217
      %s235 = sphi 0, %s235
      %s237 = sphi 0, %s235
      %s238 = sphi 0, %s237
      %s252 = sphi 0, %s238
      %s256 = sphi 0, %s256
      %s258 = sphi 0, %s256
      %s259 = sphi 0, %s258
      %s273 = sphi 0, %s259
      %s277 = sphi 0, %s277
      %s279 = sphi 0, %s277
      %s280 = sphi 0, %s279
      %s294 = sphi 0, %s280
      %s298 = sphi 0, %s298
      %s300 = sphi 0, %s298
      %s301 = sphi 0, %s300
      %s315 = sphi 0, %s301
      %s319 = sphi 0, %s319
      %s321 = sphi 0, %s319
      %s322 = sphi 0, %s321
      %s336 = sphi 0, %s322
      %s340 = sphi 0, %s340
      %s342 = sphi 0, %s340
      %s343 = sphi 0, %s342
      %s357 = sphi 0, %s343
      %s361 = sphi 0, %s361
      %s363 = sphi 0, %s361
      %s364 = sphi 0, %s363
      %s378 = sphi 0, %s364
      %s382 = sphi 0, %s382
      %s384 = sphi 0, %s382
      %s385 = sphi 0, %s384
      %s399 = sphi 0, %s385
      %s403 = sphi 0, %s403
      %s405 = sphi 0, %s403
      %s406 = sphi 0, %s405
      %s420 = sphi 0, %s406
      %s424 = sphi 0, %s424
      %s426 = sphi 0, %s424
      %s427 = sphi 0, %s426
      %s441 = sphi 0, %s427
      %s445 = sphi 0, %s445
      %s447 = sphi 0, %s445
      %s448 = sphi 0, %s447
      %s462 = sphi 0, %s448
      %s466 = sphi 0, %s466
      %s468 = sphi 0, %s466
      %s469 = sphi 0, %s468
      %s483 = sphi 0, %s469
      %s487 = sphi 0, %s487
      %s489 = sphi 0, %s487
      %s490 = sphi 0, %s489
      %s504 = sphi 0, %s490
      %s508 = sphi 0, %s508
      %s510 = sphi 0, %s508
      %s511 = sphi 0, %s510
      %s525 = sphi 0, %s511
      %s529 = sphi 0, %s529
      %s531 = sphi 0, %s529
      %s532 = sphi 0, %s531
      %s546 = sphi 0, %s532
      %s550 = sphi 0, %s550
      %s552 = sphi 0, %s550
      %s553 = sphi 0, %s552
      %s567 = sphi 0, %s553
      %s571 = sphi 0, %s571
      %s573 = sphi 0, %s571
      %s574 = sphi 0, %s573
      %s588 = sphi 0, %s574
      %s594 = sphi 0, %s596
      %s597 = sphi 0, %s594
      %s598 = sphi 0, %s597
      %s614 = sphi 0, %s598
    $region4: #{tpu_custom_call.1} parent=1 // loop_header_branch
      %47 = sbr.rel (%p45) target = $region8
    $region5: #{tpu_custom_call.1} parent=1 // loop_body
      %s49 = ssub.s32 %s44, 1
      %s50 = ssub.s32 %s44, 2
      %s51 = sadd.s32 %s44, 1
      %s52 = ssub.s32 %s44, %s51
      %p53 = scmp.eq.s32.totalorder %s52, 0
      %s55 = sadd.s32 %s54, 1
      %s56 = scalar_select %p53, %s54, %s55
      %p59 = pneg %p53
      %p60 = scmp.eq.s32.totalorder %s44, 1
      %p61 = por %p59, %p60
      %p62 = scmp.ne.s32.totalorder %s54, %s57
      %p63 = scmp.eq.s32.totalorder %s44, 0
      %p64 = por %p62, %p63
      %p65 = scmp.ne.s32.totalorder %s54, %s57
      %p66 = scmp.eq.s32.totalorder %s49, 1
      %p67 = por %p65, %p66
      %p68 = scmp.ne.s32.totalorder %s57, %s58
      %p69 = scmp.eq.s32.totalorder %s49, 0
      %p70 = por %p68, %p69
      %p71 = scmp.ne.s32.totalorder %s57, %s58
      %p72 = scmp.eq.s32.totalorder %s50, 1
      %p73 = por %p71, %p72
      %p75 = scmp.ne.s32.totalorder %s58, %s74
      %p76 = scmp.eq.s32.totalorder %s50, 0
      %p77 = por %p75, %p76
      %s78 = ssub.s32 %s44, %s51
      %p79 = scmp.eq.s32.totalorder %s78, 0
      %s81 = sadd.s32 %s80, 1
      %s82 = scalar_select %p79, %s80, %s81
      %p85 = pneg %p79
      %p86 = scmp.eq.s32.totalorder %s44, 1
      %p87 = por %p85, %p86
      %p88 = scmp.ne.s32.totalorder %s80, %s83
      %p89 = scmp.eq.s32.totalorder %s44, 0
      %p90 = por %p88, %p89
      %p91 = scmp.ne.s32.totalorder %s80, %s83
      %p92 = scmp.eq.s32.totalorder %s49, 1
      %p93 = por %p91, %p92
      %p94 = scmp.ne.s32.totalorder %s83, %s84
      %p95 = scmp.eq.s32.totalorder %s49, 0
      %p96 = por %p94, %p95
      %p97 = scmp.ne.s32.totalorder %s83, %s84
      %p98 = scmp.eq.s32.totalorder %s50, 1
      %p99 = por %p97, %p98
      %p101 = scmp.ne.s32.totalorder %s84, %s100
      %p102 = scmp.eq.s32.totalorder %s50, 0
      %p103 = por %p101, %p102
      %s104 = ssub.s32 %s44, %s51
      %p105 = scmp.eq.s32.totalorder %s104, 0
      %s107 = sadd.s32 %s106, 1
      %s108 = scalar_select %p105, %s106, %s107
      %p111 = pneg %p105
      %p112 = scmp.eq.s32.totalorder %s44, 1
      %p113 = por %p111, %p112
      %p114 = scmp.ne.s32.totalorder %s106, %s109
      %p115 = scmp.eq.s32.totalorder %s44, 0
      %p116 = por %p114, %p115
      %p117 = scmp.ne.s32.totalorder %s106, %s109
      %p118 = scmp.eq.s32.totalorder %s49, 1
      %p119 = por %p117, %p118
      %p120 = scmp.ne.s32.totalorder %s109, %s110
      %p121 = scmp.eq.s32.totalorder %s49, 0
      %p122 = por %p120, %p121
      %p123 = scmp.ne.s32.totalorder %s109, %s110
      %p124 = scmp.eq.s32.totalorder %s50, 1
      %p125 = por %p123, %p124
      %p127 = scmp.ne.s32.totalorder %s110, %s126
      %p128 = scmp.eq.s32.totalorder %s50, 0
      %p129 = por %p127, %p128
      %s131 = sadd.s32 %s130, 1
      %p134 = scmp.eq.s32.totalorder %s44, 1
      %p135 = scmp.ne.s32.totalorder %s130, %s132
      %p136 = scmp.eq.s32.totalorder %s44, 0
      %p137 = por %p135, %p136
      %p138 = scmp.ne.s32.totalorder %s130, %s132
      %p139 = scmp.eq.s32.totalorder %s49, 1
      %p140 = por %p138, %p139
      %p141 = scmp.ne.s32.totalorder %s132, %s133
      %p142 = scmp.eq.s32.totalorder %s49, 0
      %p143 = por %p141, %p142
      %p144 = scmp.ne.s32.totalorder %s132, %s133
      %p145 = scmp.eq.s32.totalorder %s50, 1
      %p146 = por %p144, %p145
      %p148 = scmp.ne.s32.totalorder %s133, %s147
      %p149 = scmp.eq.s32.totalorder %s50, 0
      %p150 = por %p148, %p149
      %s152 = sadd.s32 %s151, 1
      %p155 = scmp.eq.s32.totalorder %s44, 1
      %p156 = scmp.ne.s32.totalorder %s151, %s153
      %p157 = scmp.eq.s32.totalorder %s44, 0
      %p158 = por %p156, %p157
      %p159 = scmp.ne.s32.totalorder %s151, %s153
      %p160 = scmp.eq.s32.totalorder %s49, 1
      %p161 = por %p159, %p160
      %p162 = scmp.ne.s32.totalorder %s153, %s154
      %p163 = scmp.eq.s32.totalorder %s49, 0
      %p164 = por %p162, %p163
      %p165 = scmp.ne.s32.totalorder %s153, %s154
      %p166 = scmp.eq.s32.totalorder %s50, 1
      %p167 = por %p165, %p166
      %p169 = scmp.ne.s32.totalorder %s154, %s168
      %p170 = scmp.eq.s32.totalorder %s50, 0
      %p171 = por %p169, %p170
      %s173 = sadd.s32 %s172, 1
      %p176 = scmp.eq.s32.totalorder %s44, 1
      %p177 = scmp.ne.s32.totalorder %s172, %s174
      %p178 = scmp.eq.s32.totalorder %s44, 0
      %p179 = por %p177, %p178
      %p180 = scmp.ne.s32.totalorder %s172, %s174
      %p181 = scmp.eq.s32.totalorder %s49, 1
      %p182 = por %p180, %p181
      %p183 = scmp.ne.s32.totalorder %s174, %s175
      %p184 = scmp.eq.s32.totalorder %s49, 0
      %p185 = por %p183, %p184
      %p186 = scmp.ne.s32.totalorder %s174, %s175
      %p187 = scmp.eq.s32.totalorder %s50, 1
      %p188 = por %p186, %p187
      %p190 = scmp.ne.s32.totalorder %s175, %s189
      %p191 = scmp.eq.s32.totalorder %s50, 0
      %p192 = por %p190, %p191
      %s194 = sadd.s32 %s193, 1
      %p197 = scmp.eq.s32.totalorder %s44, 1
      %p198 = scmp.ne.s32.totalorder %s193, %s195
      %p199 = scmp.eq.s32.totalorder %s44, 0
      %p200 = por %p198, %p199
      %p201 = scmp.ne.s32.totalorder %s193, %s195
      %p202 = scmp.eq.s32.totalorder %s49, 1
      %p203 = por %p201, %p202
      %p204 = scmp.ne.s32.totalorder %s195, %s196
      %p205 = scmp.eq.s32.totalorder %s49, 0
      %p206 = por %p204, %p205
      %p207 = scmp.ne.s32.totalorder %s195, %s196
      %p208 = scmp.eq.s32.totalorder %s50, 1
      %p209 = por %p207, %p208
      %p211 = scmp.ne.s32.totalorder %s196, %s210
      %p212 = scmp.eq.s32.totalorder %s50, 0
      %p213 = por %p211, %p212
      %s215 = sadd.s32 %s214, 1
      %p218 = scmp.eq.s32.totalorder %s44, 1
      %p219 = scmp.ne.s32.totalorder %s214, %s216
      %p220 = scmp.eq.s32.totalorder %s44, 0
      %p221 = por %p219, %p220
      %p222 = scmp.ne.s32.totalorder %s214, %s216
      %p223 = scmp.eq.s32.totalorder %s49, 1
      %p224 = por %p222, %p223
      %p225 = scmp.ne.s32.totalorder %s216, %s217
      %p226 = scmp.eq.s32.totalorder %s49, 0
      %p227 = por %p225, %p226
      %p228 = scmp.ne.s32.totalorder %s216, %s217
      %p229 = scmp.eq.s32.totalorder %s50, 1
      %p230 = por %p228, %p229
      %p232 = scmp.ne.s32.totalorder %s217, %s231
      %p233 = scmp.eq.s32.totalorder %s50, 0
      %p234 = por %p232, %p233
      %s236 = sadd.s32 %s235, 1
      %p239 = scmp.eq.s32.totalorder %s44, 1
      %p240 = scmp.ne.s32.totalorder %s235, %s237
      %p241 = scmp.eq.s32.totalorder %s44, 0
      %p242 = por %p240, %p241
      %p243 = scmp.ne.s32.totalorder %s235, %s237
      %p244 = scmp.eq.s32.totalorder %s49, 1
      %p245 = por %p243, %p244
      %p246 = scmp.ne.s32.totalorder %s237, %s238
      %p247 = scmp.eq.s32.totalorder %s49, 0
      %p248 = por %p246, %p247
      %p249 = scmp.ne.s32.totalorder %s237, %s238
      %p250 = scmp.eq.s32.totalorder %s50, 1
      %p251 = por %p249, %p250
      %p253 = scmp.ne.s32.totalorder %s238, %s252
      %p254 = scmp.eq.s32.totalorder %s50, 0
      %p255 = por %p253, %p254
      %s257 = sadd.s32 %s256, 1
      %p260 = scmp.eq.s32.totalorder %s44, 1
      %p261 = scmp.ne.s32.totalorder %s256, %s258
      %p262 = scmp.eq.s32.totalorder %s44, 0
      %p263 = por %p261, %p262
      %p264 = scmp.ne.s32.totalorder %s256, %s258
      %p265 = scmp.eq.s32.totalorder %s49, 1
      %p266 = por %p264, %p265
      %p267 = scmp.ne.s32.totalorder %s258, %s259
      %p268 = scmp.eq.s32.totalorder %s49, 0
      %p269 = por %p267, %p268
      %p270 = scmp.ne.s32.totalorder %s258, %s259
      %p271 = scmp.eq.s32.totalorder %s50, 1
      %p272 = por %p270, %p271
      %p274 = scmp.ne.s32.totalorder %s259, %s273
      %p275 = scmp.eq.s32.totalorder %s50, 0
      %p276 = por %p274, %p275
      %s278 = sadd.s32 %s277, 1
      %p281 = scmp.eq.s32.totalorder %s44, 1
      %p282 = scmp.ne.s32.totalorder %s277, %s279
      %p283 = scmp.eq.s32.totalorder %s44, 0
      %p284 = por %p282, %p283
      %p285 = scmp.ne.s32.totalorder %s277, %s279
      %p286 = scmp.eq.s32.totalorder %s49, 1
      %p287 = por %p285, %p286
      %p288 = scmp.ne.s32.totalorder %s279, %s280
      %p289 = scmp.eq.s32.totalorder %s49, 0
      %p290 = por %p288, %p289
      %p291 = scmp.ne.s32.totalorder %s279, %s280
      %p292 = scmp.eq.s32.totalorder %s50, 1
      %p293 = por %p291, %p292
      %p295 = scmp.ne.s32.totalorder %s280, %s294
      %p296 = scmp.eq.s32.totalorder %s50, 0
      %p297 = por %p295, %p296
      %s299 = sadd.s32 %s298, 1
      %p302 = scmp.eq.s32.totalorder %s44, 1
      %p303 = scmp.ne.s32.totalorder %s298, %s300
      %p304 = scmp.eq.s32.totalorder %s44, 0
      %p305 = por %p303, %p304
      %p306 = scmp.ne.s32.totalorder %s298, %s300
      %p307 = scmp.eq.s32.totalorder %s49, 1
      %p308 = por %p306, %p307
      %p309 = scmp.ne.s32.totalorder %s300, %s301
      %p310 = scmp.eq.s32.totalorder %s49, 0
      %p311 = por %p309, %p310
      %p312 = scmp.ne.s32.totalorder %s300, %s301
      %p313 = scmp.eq.s32.totalorder %s50, 1
      %p314 = por %p312, %p313
      %p316 = scmp.ne.s32.totalorder %s301, %s315
      %p317 = scmp.eq.s32.totalorder %s50, 0
      %p318 = por %p316, %p317
      %s320 = sadd.s32 %s319, 1
      %p323 = scmp.eq.s32.totalorder %s44, 1
      %p324 = scmp.ne.s32.totalorder %s319, %s321
      %p325 = scmp.eq.s32.totalorder %s44, 0
      %p326 = por %p324, %p325
      %p327 = scmp.ne.s32.totalorder %s319, %s321
      %p328 = scmp.eq.s32.totalorder %s49, 1
      %p329 = por %p327, %p328
      %p330 = scmp.ne.s32.totalorder %s321, %s322
      %p331 = scmp.eq.s32.totalorder %s49, 0
      %p332 = por %p330, %p331
      %p333 = scmp.ne.s32.totalorder %s321, %s322
      %p334 = scmp.eq.s32.totalorder %s50, 1
      %p335 = por %p333, %p334
      %p337 = scmp.ne.s32.totalorder %s322, %s336
      %p338 = scmp.eq.s32.totalorder %s50, 0
      %p339 = por %p337, %p338
      %s341 = sadd.s32 %s340, 1
      %p344 = scmp.eq.s32.totalorder %s44, 1
      %p345 = scmp.ne.s32.totalorder %s340, %s342
      %p346 = scmp.eq.s32.totalorder %s44, 0
      %p347 = por %p345, %p346
      %p348 = scmp.ne.s32.totalorder %s340, %s342
      %p349 = scmp.eq.s32.totalorder %s49, 1
      %p350 = por %p348, %p349
      %p351 = scmp.ne.s32.totalorder %s342, %s343
      %p352 = scmp.eq.s32.totalorder %s49, 0
      %p353 = por %p351, %p352
      %p354 = scmp.ne.s32.totalorder %s342, %s343
      %p355 = scmp.eq.s32.totalorder %s50, 1
      %p356 = por %p354, %p355
      %p358 = scmp.ne.s32.totalorder %s343, %s357
      %p359 = scmp.eq.s32.totalorder %s50, 0
      %p360 = por %p358, %p359
      %s362 = sadd.s32 %s361, 1
      %p365 = scmp.eq.s32.totalorder %s44, 1
      %p366 = scmp.ne.s32.totalorder %s361, %s363
      %p367 = scmp.eq.s32.totalorder %s44, 0
      %p368 = por %p366, %p367
      %p369 = scmp.ne.s32.totalorder %s361, %s363
      %p370 = scmp.eq.s32.totalorder %s49, 1
      %p371 = por %p369, %p370
      %p372 = scmp.ne.s32.totalorder %s363, %s364
      %p373 = scmp.eq.s32.totalorder %s49, 0
      %p374 = por %p372, %p373
      %p375 = scmp.ne.s32.totalorder %s363, %s364
      %p376 = scmp.eq.s32.totalorder %s50, 1
      %p377 = por %p375, %p376
      %p379 = scmp.ne.s32.totalorder %s364, %s378
      %p380 = scmp.eq.s32.totalorder %s50, 0
      %p381 = por %p379, %p380
      %s383 = sadd.s32 %s382, 1
      %p386 = scmp.eq.s32.totalorder %s44, 1
      %p387 = scmp.ne.s32.totalorder %s382, %s384
      %p388 = scmp.eq.s32.totalorder %s44, 0
      %p389 = por %p387, %p388
      %p390 = scmp.ne.s32.totalorder %s382, %s384
      %p391 = scmp.eq.s32.totalorder %s49, 1
      %p392 = por %p390, %p391
      %p393 = scmp.ne.s32.totalorder %s384, %s385
      %p394 = scmp.eq.s32.totalorder %s49, 0
      %p395 = por %p393, %p394
      %p396 = scmp.ne.s32.totalorder %s384, %s385
      %p397 = scmp.eq.s32.totalorder %s50, 1
      %p398 = por %p396, %p397
      %p400 = scmp.ne.s32.totalorder %s385, %s399
      %p401 = scmp.eq.s32.totalorder %s50, 0
      %p402 = por %p400, %p401
      %s404 = sadd.s32 %s403, 1
      %p407 = scmp.eq.s32.totalorder %s44, 1
      %p408 = scmp.ne.s32.totalorder %s403, %s405
      %p409 = scmp.eq.s32.totalorder %s44, 0
      %p410 = por %p408, %p409
      %p411 = scmp.ne.s32.totalorder %s403, %s405
      %p412 = scmp.eq.s32.totalorder %s49, 1
      %p413 = por %p411, %p412
      %p414 = scmp.ne.s32.totalorder %s405, %s406
      %p415 = scmp.eq.s32.totalorder %s49, 0
      %p416 = por %p414, %p415
      %p417 = scmp.ne.s32.totalorder %s405, %s406
      %p418 = scmp.eq.s32.totalorder %s50, 1
      %p419 = por %p417, %p418
      %p421 = scmp.ne.s32.totalorder %s406, %s420
      %p422 = scmp.eq.s32.totalorder %s50, 0
      %p423 = por %p421, %p422
      %s425 = sadd.s32 %s424, 1
      %p428 = scmp.eq.s32.totalorder %s44, 1
      %p429 = scmp.ne.s32.totalorder %s424, %s426
      %p430 = scmp.eq.s32.totalorder %s44, 0
      %p431 = por %p429, %p430
      %p432 = scmp.ne.s32.totalorder %s424, %s426
      %p433 = scmp.eq.s32.totalorder %s49, 1
      %p434 = por %p432, %p433
      %p435 = scmp.ne.s32.totalorder %s426, %s427
      %p436 = scmp.eq.s32.totalorder %s49, 0
      %p437 = por %p435, %p436
      %p438 = scmp.ne.s32.totalorder %s426, %s427
      %p439 = scmp.eq.s32.totalorder %s50, 1
      %p440 = por %p438, %p439
      %p442 = scmp.ne.s32.totalorder %s427, %s441
      %p443 = scmp.eq.s32.totalorder %s50, 0
      %p444 = por %p442, %p443
      %s446 = sadd.s32 %s445, 1
      %p449 = scmp.eq.s32.totalorder %s44, 1
      %p450 = scmp.ne.s32.totalorder %s445, %s447
      %p451 = scmp.eq.s32.totalorder %s44, 0
      %p452 = por %p450, %p451
      %p453 = scmp.ne.s32.totalorder %s445, %s447
      %p454 = scmp.eq.s32.totalorder %s49, 1
      %p455 = por %p453, %p454
      %p456 = scmp.ne.s32.totalorder %s447, %s448
      %p457 = scmp.eq.s32.totalorder %s49, 0
      %p458 = por %p456, %p457
      %p459 = scmp.ne.s32.totalorder %s447, %s448
      %p460 = scmp.eq.s32.totalorder %s50, 1
      %p461 = por %p459, %p460
      %p463 = scmp.ne.s32.totalorder %s448, %s462
      %p464 = scmp.eq.s32.totalorder %s50, 0
      %p465 = por %p463, %p464
      %s467 = sadd.s32 %s466, 1
      %p470 = scmp.eq.s32.totalorder %s44, 1
      %p471 = scmp.ne.s32.totalorder %s466, %s468
      %p472 = scmp.eq.s32.totalorder %s44, 0
      %p473 = por %p471, %p472
      %p474 = scmp.ne.s32.totalorder %s466, %s468
      %p475 = scmp.eq.s32.totalorder %s49, 1
      %p476 = por %p474, %p475
      %p477 = scmp.ne.s32.totalorder %s468, %s469
      %p478 = scmp.eq.s32.totalorder %s49, 0
      %p479 = por %p477, %p478
      %p480 = scmp.ne.s32.totalorder %s468, %s469
      %p481 = scmp.eq.s32.totalorder %s50, 1
      %p482 = por %p480, %p481
      %p484 = scmp.ne.s32.totalorder %s469, %s483
      %p485 = scmp.eq.s32.totalorder %s50, 0
      %p486 = por %p484, %p485
      %s488 = sadd.s32 %s487, 1
      %p491 = scmp.eq.s32.totalorder %s44, 1
      %p492 = scmp.ne.s32.totalorder %s487, %s489
      %p493 = scmp.eq.s32.totalorder %s44, 0
      %p494 = por %p492, %p493
      %p495 = scmp.ne.s32.totalorder %s487, %s489
      %p496 = scmp.eq.s32.totalorder %s49, 1
      %p497 = por %p495, %p496
      %p498 = scmp.ne.s32.totalorder %s489, %s490
      %p499 = scmp.eq.s32.totalorder %s49, 0
      %p500 = por %p498, %p499
      %p501 = scmp.ne.s32.totalorder %s489, %s490
      %p502 = scmp.eq.s32.totalorder %s50, 1
      %p503 = por %p501, %p502
      %p505 = scmp.ne.s32.totalorder %s490, %s504
      %p506 = scmp.eq.s32.totalorder %s50, 0
      %p507 = por %p505, %p506
      %s509 = sadd.s32 %s508, 1
      %p512 = scmp.eq.s32.totalorder %s44, 1
      %p513 = scmp.ne.s32.totalorder %s508, %s510
      %p514 = scmp.eq.s32.totalorder %s44, 0
      %p515 = por %p513, %p514
      %p516 = scmp.ne.s32.totalorder %s508, %s510
      %p517 = scmp.eq.s32.totalorder %s49, 1
      %p518 = por %p516, %p517
      %p519 = scmp.ne.s32.totalorder %s510, %s511
      %p520 = scmp.eq.s32.totalorder %s49, 0
      %p521 = por %p519, %p520
      %p522 = scmp.ne.s32.totalorder %s510, %s511
      %p523 = scmp.eq.s32.totalorder %s50, 1
      %p524 = por %p522, %p523
      %p526 = scmp.ne.s32.totalorder %s511, %s525
      %p527 = scmp.eq.s32.totalorder %s50, 0
      %p528 = por %p526, %p527
      %s530 = sadd.s32 %s529, 1
      %p533 = scmp.eq.s32.totalorder %s44, 1
      %p534 = scmp.ne.s32.totalorder %s529, %s531
      %p535 = scmp.eq.s32.totalorder %s44, 0
      %p536 = por %p534, %p535
      %p537 = scmp.ne.s32.totalorder %s529, %s531
      %p538 = scmp.eq.s32.totalorder %s49, 1
      %p539 = por %p537, %p538
      %p540 = scmp.ne.s32.totalorder %s531, %s532
      %p541 = scmp.eq.s32.totalorder %s49, 0
      %p542 = por %p540, %p541
      %p543 = scmp.ne.s32.totalorder %s531, %s532
      %p544 = scmp.eq.s32.totalorder %s50, 1
      %p545 = por %p543, %p544
      %p547 = scmp.ne.s32.totalorder %s532, %s546
      %p548 = scmp.eq.s32.totalorder %s50, 0
      %p549 = por %p547, %p548
      %s551 = sadd.s32 %s550, 1
      %p554 = scmp.eq.s32.totalorder %s44, 1
      %p555 = scmp.ne.s32.totalorder %s550, %s552
      %p556 = scmp.eq.s32.totalorder %s44, 0
      %p557 = por %p555, %p556
      %p558 = scmp.ne.s32.totalorder %s550, %s552
      %p559 = scmp.eq.s32.totalorder %s49, 1
      %p560 = por %p558, %p559
      %p561 = scmp.ne.s32.totalorder %s552, %s553
      %p562 = scmp.eq.s32.totalorder %s49, 0
      %p563 = por %p561, %p562
      %p564 = scmp.ne.s32.totalorder %s552, %s553
      %p565 = scmp.eq.s32.totalorder %s50, 1
      %p566 = por %p564, %p565
      %p568 = scmp.ne.s32.totalorder %s553, %s567
      %p569 = scmp.eq.s32.totalorder %s50, 0
      %p570 = por %p568, %p569
      %s572 = sadd.s32 %s571, 1
      %p575 = scmp.eq.s32.totalorder %s44, 1
      %p576 = scmp.ne.s32.totalorder %s571, %s573
      %p577 = scmp.eq.s32.totalorder %s44, 0
      %p578 = por %p576, %p577
      %p579 = scmp.ne.s32.totalorder %s571, %s573
      %p580 = scmp.eq.s32.totalorder %s49, 1
      %p581 = por %p579, %p580
      %p582 = scmp.ne.s32.totalorder %s573, %s574
      %p583 = scmp.eq.s32.totalorder %s49, 0
      %p584 = por %p582, %p583
      %p585 = scmp.ne.s32.totalorder %s573, %s574
      %p586 = scmp.eq.s32.totalorder %s50, 1
      %p587 = por %p585, %p586
      %p589 = scmp.ne.s32.totalorder %s574, %s588
      %p590 = scmp.eq.s32.totalorder %s50, 0
      %p591 = por %p589, %p590
      %s592 = ssub.s32 %s44, %s51
      %p593 = scmp.eq.s32.totalorder %s592, 0
      %s595 = sadd.s32 %s594, 1
      %s596 = scalar_select %p593, %s594, %s595
      %p599 = pneg %p593
      %p600 = scmp.eq.s32.totalorder %s44, 1
      %p601 = por %p599, %p600
      %p602 = scmp.ne.s32.totalorder %s594, %s597
      %p603 = scmp.eq.s32.totalorder %s44, 0
      %p604 = por %p602, %p603
      %p605 = scmp.ne.s32.totalorder %s594, %s597
      %p606 = scmp.eq.s32.totalorder %s49, 1
      %p607 = por %p605, %p606
      %p608 = scmp.ne.s32.totalorder %s597, %s598
      %p609 = scmp.eq.s32.totalorder %s49, 0
      %p610 = por %p608, %p609
      %p611 = scmp.ne.s32.totalorder %s597, %s598
      %p612 = scmp.eq.s32.totalorder %s50, 1
      %p613 = por %p611, %p612
      %p615 = scmp.ne.s32.totalorder %s598, %s614
      %p616 = scmp.eq.s32.totalorder %s50, 0
      %p617 = por %p615, %p616
      %p618 = scmp.le.s32.totalorder 1, %s44
      %p619 = scmp.lt.s32.totalorder %s44, 3
      %p620 = pnand %p618, %p619
      %p621 = pneg %p620
      // Predicated region
      $region9: #{tpu_custom_call.1} parent=5 // pred_check
        _
      $region10: #{tpu_custom_call.1} parent=5 // pred_check_branch
        %623 = sbr.rel (%p620) target = $region12
      $region11: #{tpu_custom_call.1} parent=5 // pred_region
        %s624 = ssub.s32 %s44, 1
        // Predicated region
        $region13: #{tpu_custom_call.1} parent=11 // pred_check
          %p625 = pneg %p143
        $region14: #{tpu_custom_call.1} parent=11 // pred_check_branch
          %627 = sbr.rel (%p625) target = $region16
        $region15: #{tpu_custom_call.1} parent=11 // pred_region
          _
        $region16: #{tpu_custom_call.1} parent=11 // pred_fallthru
          _
        // Predicated region
        $region17: #{tpu_custom_call.1} parent=11 // pred_check
          %p628 = pneg %p164
        $region18: #{tpu_custom_call.1} parent=11 // pred_check_branch
          %630 = sbr.rel (%p628) target = $region20
        $region19: #{tpu_custom_call.1} parent=11 // pred_region
          _
        $region20: #{tpu_custom_call.1} parent=11 // pred_fallthru
          _
        // Predicated region
        $region21: #{tpu_custom_call.1} parent=11 // pred_check
          %p631 = pneg %p185
        $region22: #{tpu_custom_call.1} parent=11 // pred_check_branch
          %633 = sbr.rel (%p631) target = $region24
        $region23: #{tpu_custom_call.1} parent=11 // pred_region
          _
        $region24: #{tpu_custom_call.1} parent=11 // pred_fallthru
          _
        // Predicated region
        $region25: #{tpu_custom_call.1} parent=11 // pred_check
          %p634 = pneg %p206
        $region26: #{tpu_custom_call.1} parent=11 // pred_check_branch
          %636 = sbr.rel (%p634) target = $region28
        $region27: #{tpu_custom_call.1} parent=11 // pred_region
          _
        $region28: #{tpu_custom_call.1} parent=11 // pred_fallthru
          _
        // Predicated region
        $region29: #{tpu_custom_call.1} parent=11 // pred_check
          %p637 = pneg %p227
        $region30: #{tpu_custom_call.1} parent=11 // pred_check_branch
          %639 = sbr.rel (%p637) target = $region32
        $region31: #{tpu_custom_call.1} parent=11 // pred_region
          %641 = vsyncadd [#allocation6], 0
          %s642 = sshll.u32 %s7, 4
          %s643 = int_to_ptr.hbm [resolvable:$true] %s642
          %s644 = sshll.u32 [#allocation5], 4
          %s645 = int_to_ptr.vmem [resolvable:$true] %s644
          %650 = dma.hbm_to_vmem [thread:$0]  %s643, 256, %s645, [#allocation6], 64, 64, 4
        $region32: #{tpu_custom_call.1} parent=11 // pred_fallthru
          _
        // Predicated region
        $region33: #{tpu_custom_call.1} parent=11 // pred_check
          %p651 = pneg %p248
        $region34: #{tpu_custom_call.1} parent=11 // pred_check_branch
          %653 = sbr.rel (%p651) target = $region36
        $region35: #{tpu_custom_call.1} parent=11 // pred_region
          _
        $region36: #{tpu_custom_call.1} parent=11 // pred_fallthru
          _
        // Predicated region
        $region37: #{tpu_custom_call.1} parent=11 // pred_check
          %p654 = pneg %p269
        $region38: #{tpu_custom_call.1} parent=11 // pred_check_branch
          %656 = sbr.rel (%p654) target = $region40
        $region39: #{tpu_custom_call.1} parent=11 // pred_region
          %658 = vsyncadd [#allocation6], 0
          %s659 = sshll.u32 %s9, 4
          %s660 = int_to_ptr.hbm [resolvable:$true] %s659
          %s661 = sshll.u32 [#allocation7], 4
          %s662 = int_to_ptr.vmem [resolvable:$true] %s661
          %667 = dma.hbm_to_vmem [thread:$0]  %s660, 256, %s662, [#allocation6], 64, 64, 4
        $region40: #{tpu_custom_call.1} parent=11 // pred_fallthru
          _
        // Predicated region
        $region41: #{tpu_custom_call.1} parent=11 // pred_check
          %p668 = pneg %p290
        $region42: #{tpu_custom_call.1} parent=11 // pred_check_branch
          %670 = sbr.rel (%p668) target = $region44
        $region43: #{tpu_custom_call.1} parent=11 // pred_region
          _
        $region44: #{tpu_custom_call.1} parent=11 // pred_fallthru
          _
        // Predicated region
        $region45: #{tpu_custom_call.1} parent=11 // pred_check
          %p671 = pneg %p311
        $region46: #{tpu_custom_call.1} parent=11 // pred_check_branch
          %673 = sbr.rel (%p671) target = $region48
        $region47: #{tpu_custom_call.1} parent=11 // pred_region
          %675 = vsyncadd [#allocation9], 0
          %s676 = sshll.u32 %s11, 4
          %s677 = int_to_ptr.hbm [resolvable:$true] %s676
          %s678 = sshll.u32 [#allocation8], 4
          %s679 = int_to_ptr.vmem [resolvable:$true] %s678
          %684 = dma.hbm_to_vmem [thread:$0]  %s677, 256, %s679, [#allocation9], 64, 64, 4
        $region48: #{tpu_custom_call.1} parent=11 // pred_fallthru
          _
        // Predicated region
        $region49: #{tpu_custom_call.1} parent=11 // pred_check
          %p685 = pneg %p332
        $region50: #{tpu_custom_call.1} parent=11 // pred_check_branch
          %687 = sbr.rel (%p685) target = $region52
        $region51: #{tpu_custom_call.1} parent=11 // pred_region
          %689 = vsyncadd [#allocation9], 0
          %s691 = sshll.u32 %s12, 4
          %s692 = int_to_ptr.hbm [resolvable:$true] %s691
          %s693 = sshll.u32 [#allocation10], 4
          %s694 = int_to_ptr.vmem [resolvable:$true] %s693
          %696 = dma.hbm_to_vmem [thread:$0]  %s692, 16, %s694, [#allocation9]
        $region52: #{tpu_custom_call.1} parent=11 // pred_fallthru
          _
        // Predicated region
        $region53: #{tpu_custom_call.1} parent=11 // pred_check
          %p697 = pneg %p353
        $region54: #{tpu_custom_call.1} parent=11 // pred_check_branch
          %699 = sbr.rel (%p697) target = $region56
        $region55: #{tpu_custom_call.1} parent=11 // pred_region
          %701 = vsyncadd [#allocation12], 0
          %s702 = sshll.u32 %s13, 4
          %s703 = int_to_ptr.hbm [resolvable:$true] %s702
          %s704 = sshll.u32 [#allocation11], 4
          %s705 = int_to_ptr.vmem [resolvable:$true] %s704
          %710 = dma.hbm_to_vmem [thread:$0]  %s703, 256, %s705, [#allocation12], 64, 64, 4
        $region56: #{tpu_custom_call.1} parent=11 // pred_fallthru
          _
        // Predicated region
        $region57: #{tpu_custom_call.1} parent=11 // pred_check
          %p711 = pneg %p374
        $region58: #{tpu_custom_call.1} parent=11 // pred_check_branch
          %713 = sbr.rel (%p711) target = $region60
        $region59: #{tpu_custom_call.1} parent=11 // pred_region
          %715 = vsyncadd [#allocation12], 0
          %s717 = sshll.u32 %s14, 4
          %s718 = int_to_ptr.hbm [resolvable:$true] %s717
          %s719 = sshll.u32 [#allocation13], 4
          %s720 = int_to_ptr.vmem [resolvable:$true] %s719
          %722 = dma.hbm_to_vmem [thread:$0]  %s718, 16, %s720, [#allocation12]
        $region60: #{tpu_custom_call.1} parent=11 // pred_fallthru
          _
        // Predicated region
        $region61: #{tpu_custom_call.1} parent=11 // pred_check
          %p723 = pneg %p395
        $region62: #{tpu_custom_call.1} parent=11 // pred_check_branch
          %725 = sbr.rel (%p723) target = $region64
        $region63: #{tpu_custom_call.1} parent=11 // pred_region
          %727 = vsyncadd [#allocation15], 0
          %s729 = sshll.u32 %s15, 4
          %s730 = int_to_ptr.hbm [resolvable:$true] %s729
          %s731 = sshll.u32 [#allocation14], 4
          %s732 = int_to_ptr.vmem [resolvable:$true] %s731
          %734 = dma.hbm_to_vmem [thread:$0]  %s730, 16, %s732, [#allocation15]
        $region64: #{tpu_custom_call.1} parent=11 // pred_fallthru
          _
        // Predicated region
        $region65: #{tpu_custom_call.1} parent=11 // pred_check
          %p735 = pneg %p416
        $region66: #{tpu_custom_call.1} parent=11 // pred_check_branch
          %737 = sbr.rel (%p735) target = $region68
        $region67: #{tpu_custom_call.1} parent=11 // pred_region
          %739 = vsyncadd [#allocation15], 0
          %s741 = sshll.u32 %s16, 4
          %s742 = int_to_ptr.hbm [resolvable:$true] %s741
          %s743 = sshll.u32 [#allocation16], 4
          %s744 = int_to_ptr.vmem [resolvable:$true] %s743
          %746 = dma.hbm_to_vmem [thread:$0]  %s742, 16, %s744, [#allocation15]
        $region68: #{tpu_custom_call.1} parent=11 // pred_fallthru
          _
        // Predicated region
        $region69: #{tpu_custom_call.1} parent=11 // pred_check
          %p747 = pneg %p437
        $region70: #{tpu_custom_call.1} parent=11 // pred_check_branch
          %749 = sbr.rel (%p747) target = $region72
        $region71: #{tpu_custom_call.1} parent=11 // pred_region
          %751 = vsyncadd [#allocation18], 0
          %s752 = sshll.u32 %s17, 4
          %s753 = int_to_ptr.hbm [resolvable:$true] %s752
          %s754 = sshll.u32 [#allocation17], 4
          %s755 = int_to_ptr.vmem [resolvable:$true] %s754
          %760 = dma.hbm_to_vmem [thread:$0]  %s753, 256, %s755, [#allocation18], 64, 64, 4
        $region72: #{tpu_custom_call.1} parent=11 // pred_fallthru
          _
        // Predicated region
        $region73: #{tpu_custom_call.1} parent=11 // pred_check
          %p761 = pneg %p458
        $region74: #{tpu_custom_call.1} parent=11 // pred_check_branch
          %763 = sbr.rel (%p761) target = $region76
        $region75: #{tpu_custom_call.1} parent=11 // pred_region
          %765 = vsyncadd [#allocation18], 0
          %s767 = sshll.u32 %s18, 4
          %s768 = int_to_ptr.hbm [resolvable:$true] %s767
          %s769 = sshll.u32 [#allocation19], 4
          %s770 = int_to_ptr.vmem [resolvable:$true] %s769
          %772 = dma.hbm_to_vmem [thread:$0]  %s768, 16, %s770, [#allocation18]
        $region76: #{tpu_custom_call.1} parent=11 // pred_fallthru
          _
        // Predicated region
        $region77: #{tpu_custom_call.1} parent=11 // pred_check
          %p773 = pneg %p479
        $region78: #{tpu_custom_call.1} parent=11 // pred_check_branch
          %775 = sbr.rel (%p773) target = $region80
        $region79: #{tpu_custom_call.1} parent=11 // pred_region
          %777 = vsyncadd [#allocation21], 0
          %s778 = sshll.u32 %s19, 4
          %s779 = int_to_ptr.hbm [resolvable:$true] %s778
          %s780 = sshll.u32 [#allocation20], 4
          %s781 = int_to_ptr.vmem [resolvable:$true] %s780
          %786 = dma.hbm_to_vmem [thread:$0]  %s779, 256, %s781, [#allocation21], 64, 64, 4
        $region80: #{tpu_custom_call.1} parent=11 // pred_fallthru
          _
        // Predicated region
        $region81: #{tpu_custom_call.1} parent=11 // pred_check
          %p787 = pneg %p500
        $region82: #{tpu_custom_call.1} parent=11 // pred_check_branch
          %789 = sbr.rel (%p787) target = $region84
        $region83: #{tpu_custom_call.1} parent=11 // pred_region
          %791 = vsyncadd [#allocation21], 0
          %s793 = sshll.u32 %s20, 4
          %s794 = int_to_ptr.hbm [resolvable:$true] %s793
          %s795 = sshll.u32 [#allocation22], 4
          %s796 = int_to_ptr.vmem [resolvable:$true] %s795
          %798 = dma.hbm_to_vmem [thread:$0]  %s794, 16, %s796, [#allocation21]
        $region84: #{tpu_custom_call.1} parent=11 // pred_fallthru
          _
        // Predicated region
        $region85: #{tpu_custom_call.1} parent=11 // pred_check
          %p799 = pneg %p521
        $region86: #{tpu_custom_call.1} parent=11 // pred_check_branch
          %801 = sbr.rel (%p799) target = $region88
        $region87: #{tpu_custom_call.1} parent=11 // pred_region
          %803 = vsyncadd [#allocation24], 0
          %s805 = sshll.u32 %s21, 4
          %s806 = int_to_ptr.hbm [resolvable:$true] %s805
          %s807 = sshll.u32 [#allocation23], 4
          %s808 = int_to_ptr.vmem [resolvable:$true] %s807
          %810 = dma.hbm_to_vmem [thread:$0]  %s806, 16, %s808, [#allocation24]
        $region88: #{tpu_custom_call.1} parent=11 // pred_fallthru
          _
        // Predicated region
        $region89: #{tpu_custom_call.1} parent=11 // pred_check
          %p811 = pneg %p542
        $region90: #{tpu_custom_call.1} parent=11 // pred_check_branch
          %813 = sbr.rel (%p811) target = $region92
        $region91: #{tpu_custom_call.1} parent=11 // pred_region
          %815 = vsyncadd [#allocation24], 0
          %s817 = sshll.u32 %s22, 4
          %s818 = int_to_ptr.hbm [resolvable:$true] %s817
          %s819 = sshll.u32 [#allocation25], 4
          %s820 = int_to_ptr.vmem [resolvable:$true] %s819
          %822 = dma.hbm_to_vmem [thread:$0]  %s818, 16, %s820, [#allocation24]
        $region92: #{tpu_custom_call.1} parent=11 // pred_fallthru
          _
        // Predicated region
        $region93: #{tpu_custom_call.1} parent=11 // pred_check
          %p823 = pneg %p563
        $region94: #{tpu_custom_call.1} parent=11 // pred_check_branch
          %825 = sbr.rel (%p823) target = $region96
        $region95: #{tpu_custom_call.1} parent=11 // pred_region
          _
        $region96: #{tpu_custom_call.1} parent=11 // pred_fallthru
          _
        // Predicated region
        $region97: #{tpu_custom_call.1} parent=11 // pred_check
          %p826 = pneg %p584
        $region98: #{tpu_custom_call.1} parent=11 // pred_check_branch
          %828 = sbr.rel (%p826) target = $region100
        $region99: #{tpu_custom_call.1} parent=11 // pred_region
          _
        $region100: #{tpu_custom_call.1} parent=11 // pred_fallthru
          _
      $region12: #{tpu_custom_call.1} parent=5 // pred_fallthru
        _
      %p829 = scmp.lt.s32.totalorder %s44, 2
      // Predicated region
      $region101: #{tpu_custom_call.1} parent=5 // pred_check
        %p830 = pneg %p829
      $region102: #{tpu_custom_call.1} parent=5 // pred_check_branch
        %832 = sbr.rel (%p830) target = $region104
      $region103: #{tpu_custom_call.1} parent=5 // pred_region
        // Predicated region
        $region105: #{tpu_custom_call.1} parent=103 // pred_check
          %p833 = pneg %p64
        $region106: #{tpu_custom_call.1} parent=103 // pred_check_branch
          %835 = sbr.rel (%p833) target = $region108
        $region107: #{tpu_custom_call.1} parent=103 // pred_region
          %s836 = smul.u32 2, %s44
          %p837 = scmp.lt.s32.totalorder %s836, 3
          %s838 = scalar_select %p837, %s836, 3
          %s839 = smul.addr %s838, 4
          %s840 = scalar_lea.vmem %s0, %s839
          %s841 = smul.u32 2, %s44
        $region108: #{tpu_custom_call.1} parent=103 // pred_fallthru
          _
        // Predicated region
        $region109: #{tpu_custom_call.1} parent=103 // pred_check
          %p842 = pneg %p90
        $region110: #{tpu_custom_call.1} parent=103 // pred_check_branch
          %844 = sbr.rel (%p842) target = $region112
        $region111: #{tpu_custom_call.1} parent=103 // pred_region
          %s845 = smul.u32 2, %s44
          %p846 = scmp.lt.s32.totalorder %s845, 3
          %s847 = scalar_select %p846, %s845, 3
          %s848 = smul.addr %s847, 2
          %s849 = smul.addr %s848, 4
          %s850 = scalar_lea.vmem %s1, %s849
          %s851 = smul.u32 2, %s44
        $region112: #{tpu_custom_call.1} parent=103 // pred_fallthru
          _
        // Predicated region
        $region113: #{tpu_custom_call.1} parent=103 // pred_check
          %p852 = pneg %p116
        $region114: #{tpu_custom_call.1} parent=103 // pred_check_branch
          %854 = sbr.rel (%p852) target = $region116
        $region115: #{tpu_custom_call.1} parent=103 // pred_region
          %s855 = sand.u32 %s106, 1
          %s856 = scalar_lea.sflag [#allocation3], %s855
          %s857 = sand.u32 %s106, 1
          %s858 = smul.addr %s857, 2
          %s859 = scalar_lea.vmem [#allocation2], %s858
          %s860 = smul.u32 2, %s44
          %862 = vsyncadd %s856, 0
          %s863 = scalar_lea.hbm %s2, %s860
          %s864 = sshll.u32 %s863, 4
          %s865 = int_to_ptr.hbm [resolvable:$true] %s864
          %s866 = sshll.u32 %s859, 4
          %s867 = int_to_ptr.vmem [resolvable:$true] %s866
          %872 = dma.hbm_to_vmem [thread:$0]  %s865, 32, %s867, %s856, 16, 16, 1
        $region116: #{tpu_custom_call.1} parent=103 // pred_fallthru
          _
      $region104: #{tpu_custom_call.1} parent=5 // pred_fallthru
        _
      %p873 = scmp.le.s32.totalorder 1, %s44
      %p874 = scmp.lt.s32.totalorder %s44, 3
      %p875 = pnand %p873, %p874
      %p876 = pneg %p875
      // Predicated region
      $region117: #{tpu_custom_call.1} parent=5 // pred_check
        _
      $region118: #{tpu_custom_call.1} parent=5 // pred_check_branch
        %878 = sbr.rel (%p875) target = $region120
      $region119: #{tpu_custom_call.1} parent=5 // pred_region
        %s879 = ssub.s32 %s44, 1
        %s880 = sand.u32 %s109, 1
        %s881 = scalar_lea.sflag [#allocation3], %s880
        %s882 = sand.u32 %s109, 1
        %s883 = smul.addr %s882, 2
        %s884 = scalar_lea.vmem [#allocation2], %s883
        // Predicated region
        $region121: #{tpu_custom_call.1} parent=119 // pred_check
          %p885 = pneg %p122
        $region122: #{tpu_custom_call.1} parent=119 // pred_check_branch
          %887 = sbr.rel (%p885) target = $region124
        $region123: #{tpu_custom_call.1} parent=119 // pred_region
          %889 = dma.done %s881, 32
        $region124: #{tpu_custom_call.1} parent=119 // pred_fallthru
          _
        // Predicated region
        $region125: #{tpu_custom_call.1} parent=119 // pred_check
          %p890 = pneg %p227
        $region126: #{tpu_custom_call.1} parent=119 // pred_check_branch
          %892 = sbr.rel (%p890) target = $region128
        $region127: #{tpu_custom_call.1} parent=119 // pred_region
          %894 = dma.done [#allocation6], 256
        $region128: #{tpu_custom_call.1} parent=119 // pred_fallthru
          _
        // Predicated region
        $region129: #{tpu_custom_call.1} parent=119 // pred_check
          %p895 = pneg %p269
        $region130: #{tpu_custom_call.1} parent=119 // pred_check_branch
          %897 = sbr.rel (%p895) target = $region132
        $region131: #{tpu_custom_call.1} parent=119 // pred_region
          %899 = dma.done [#allocation6], 256
        $region132: #{tpu_custom_call.1} parent=119 // pred_fallthru
          _
        // Predicated region
        $region133: #{tpu_custom_call.1} parent=119 // pred_check
          %p900 = pneg %p311
        $region134: #{tpu_custom_call.1} parent=119 // pred_check_branch
          %902 = sbr.rel (%p900) target = $region136
        $region135: #{tpu_custom_call.1} parent=119 // pred_region
          %904 = dma.done [#allocation9], 256
        $region136: #{tpu_custom_call.1} parent=119 // pred_fallthru
          _
        // Predicated region
        $region137: #{tpu_custom_call.1} parent=119 // pred_check
          %p905 = pneg %p332
        $region138: #{tpu_custom_call.1} parent=119 // pred_check_branch
          %907 = sbr.rel (%p905) target = $region140
        $region139: #{tpu_custom_call.1} parent=119 // pred_region
          %909 = dma.done [#allocation9], 16
        $region140: #{tpu_custom_call.1} parent=119 // pred_fallthru
          _
        // Predicated region
        $region141: #{tpu_custom_call.1} parent=119 // pred_check
          %p910 = pneg %p353
        $region142: #{tpu_custom_call.1} parent=119 // pred_check_branch
          %912 = sbr.rel (%p910) target = $region144
        $region143: #{tpu_custom_call.1} parent=119 // pred_region
          %914 = dma.done [#allocation12], 256
        $region144: #{tpu_custom_call.1} parent=119 // pred_fallthru
          _
        // Predicated region
        $region145: #{tpu_custom_call.1} parent=119 // pred_check
          %p915 = pneg %p374
        $region146: #{tpu_custom_call.1} parent=119 // pred_check_branch
          %917 = sbr.rel (%p915) target = $region148
        $region147: #{tpu_custom_call.1} parent=119 // pred_region
          %919 = dma.done [#allocation12], 16
        $region148: #{tpu_custom_call.1} parent=119 // pred_fallthru
          _
        // Predicated region
        $region149: #{tpu_custom_call.1} parent=119 // pred_check
          %p920 = pneg %p395
        $region150: #{tpu_custom_call.1} parent=119 // pred_check_branch
          %922 = sbr.rel (%p920) target = $region152
        $region151: #{tpu_custom_call.1} parent=119 // pred_region
          %924 = dma.done [#allocation15], 16
        $region152: #{tpu_custom_call.1} parent=119 // pred_fallthru
          _
        // Predicated region
        $region153: #{tpu_custom_call.1} parent=119 // pred_check
          %p925 = pneg %p416
        $region154: #{tpu_custom_call.1} parent=119 // pred_check_branch
          %927 = sbr.rel (%p925) target = $region156
        $region155: #{tpu_custom_call.1} parent=119 // pred_region
          %929 = dma.done [#allocation15], 16
        $region156: #{tpu_custom_call.1} parent=119 // pred_fallthru
          _
        // Predicated region
        $region157: #{tpu_custom_call.1} parent=119 // pred_check
          %p930 = pneg %p437
        $region158: #{tpu_custom_call.1} parent=119 // pred_check_branch
          %932 = sbr.rel (%p930) target = $region160
        $region159: #{tpu_custom_call.1} parent=119 // pred_region
          %934 = dma.done [#allocation18], 256
        $region160: #{tpu_custom_call.1} parent=119 // pred_fallthru
          _
        // Predicated region
        $region161: #{tpu_custom_call.1} parent=119 // pred_check
          %p935 = pneg %p458
        $region162: #{tpu_custom_call.1} parent=119 // pred_check_branch
          %937 = sbr.rel (%p935) target = $region164
        $region163: #{tpu_custom_call.1} parent=119 // pred_region
          %939 = dma.done [#allocation18], 16
        $region164: #{tpu_custom_call.1} parent=119 // pred_fallthru
          _
        // Predicated region
        $region165: #{tpu_custom_call.1} parent=119 // pred_check
          %p940 = pneg %p479
        $region166: #{tpu_custom_call.1} parent=119 // pred_check_branch
          %942 = sbr.rel (%p940) target = $region168
        $region167: #{tpu_custom_call.1} parent=119 // pred_region
          %944 = dma.done [#allocation21], 256
        $region168: #{tpu_custom_call.1} parent=119 // pred_fallthru
          _
        // Predicated region
        $region169: #{tpu_custom_call.1} parent=119 // pred_check
          %p945 = pneg %p500
        $region170: #{tpu_custom_call.1} parent=119 // pred_check_branch
          %947 = sbr.rel (%p945) target = $region172
        $region171: #{tpu_custom_call.1} parent=119 // pred_region
          %949 = dma.done [#allocation21], 16
        $region172: #{tpu_custom_call.1} parent=119 // pred_fallthru
          _
        // Predicated region
        $region173: #{tpu_custom_call.1} parent=119 // pred_check
          %p950 = pneg %p521
        $region174: #{tpu_custom_call.1} parent=119 // pred_check_branch
          %952 = sbr.rel (%p950) target = $region176
        $region175: #{tpu_custom_call.1} parent=119 // pred_region
          %954 = dma.done [#allocation24], 16
        $region176: #{tpu_custom_call.1} parent=119 // pred_fallthru
          _
        // Predicated region
        $region177: #{tpu_custom_call.1} parent=119 // pred_check
          %p955 = pneg %p542
        $region178: #{tpu_custom_call.1} parent=119 // pred_check_branch
          %957 = sbr.rel (%p955) target = $region180
        $region179: #{tpu_custom_call.1} parent=119 // pred_region
          %959 = dma.done [#allocation24], 16
        $region180: #{tpu_custom_call.1} parent=119 // pred_fallthru
          _
        %s960 = smul.u32 2, %s49
        %p961 = scmp.lt.s32.totalorder %s960, 3
        %s962 = scalar_select %p961, %s960, 3
        %s963 = smul.addr %s962, 4
        %s964 = scalar_lea.vmem %s0, %s963
        %p965 = pneg %p70
        %p966 = pneg %p67
        %s967 = smul.u32 2, %s49
        %p968 = scmp.lt.s32.totalorder %s967, 3
        %s969 = scalar_select %p968, %s967, 3
        %s970 = smul.addr %s969, 2
        %s971 = smul.addr %s970, 4
        %s972 = scalar_lea.vmem %s1, %s971
        %p973 = pneg %p96
        %p974 = pneg %p93
        %s975 = sand.u32 %s109, 1
        %s976 = scalar_lea.sflag [#allocation3], %s975
        %s977 = sand.u32 %s109, 1
        %s978 = smul.addr %s977, 2
        %s979 = scalar_lea.vmem [#allocation2], %s978
        %p980 = pneg %p122
        %p981 = pneg %p119
        %p982 = pneg %p143
        %p983 = pneg %p140
        %p984 = pneg %p164
        %p985 = pneg %p161
        %p986 = pneg %p185
        %p987 = pneg %p182
        %p988 = pneg %p206
        %p989 = pneg %p203
        %p990 = pneg %p227
        %p991 = pneg %p224
        %p992 = pneg %p248
        %p993 = pneg %p245
        %p994 = pneg %p269
        %p995 = pneg %p266
        %p996 = pneg %p290
        %p997 = pneg %p287
        %p998 = pneg %p311
        %p999 = pneg %p308
        %p1000 = pneg %p332
        %p1001 = pneg %p329
        %p1002 = pneg %p353
        %p1003 = pneg %p350
        %p1004 = pneg %p374
        %p1005 = pneg %p371
        %p1006 = pneg %p395
        %p1007 = pneg %p392
        %p1008 = pneg %p416
        %p1009 = pneg %p413
        %p1010 = pneg %p437
        %p1011 = pneg %p434
        %p1012 = pneg %p458
        %p1013 = pneg %p455
        %p1014 = pneg %p479
        %p1015 = pneg %p476
        %p1016 = pneg %p500
        %p1017 = pneg %p497
        %p1018 = pneg %p521
        %p1019 = pneg %p518
        %p1020 = pneg %p542
        %p1021 = pneg %p539
        %p1022 = pneg %p563
        %p1023 = pneg %p560
        %p1024 = pneg %p584
        %p1025 = pneg %p581
        %p1026 = pneg %p610
        %p1027 = pneg %p607
        %s1028 = sand.u32 %s597, 1
        %s1029 = scalar_lea.sflag [#allocation4], %s1028
        %s1030 = sand.u32 %s597, 1
        %s1031 = smul.addr %s1030, 16
        %s1032 = scalar_lea.vmem [#allocation26], %s1031
        %s1033 = smul.u32 2, %s49
        %p1034 = scmp.lt.s32.totalorder %s1033, 3
        %s1035 = scalar_select %p1034, %s1033, 3
        %s1036 = smul.addr %s1035, 4
        %s1037 = scalar_lea.vmem %s0, %s1036
        %s1038 = smul.u32 2, %s49
        %s1039 = smul.u32 2, %s49
        %p1040 = scmp.lt.s32.totalorder %s1039, 3
        %s1041 = scalar_select %p1040, %s1039, 3
        %s1042 = smul.addr %s1041, 2
        %s1043 = smul.addr %s1042, 4
        %s1044 = scalar_lea.vmem %s1, %s1043
        %s1045 = smul.u32 2, %s49
        %s1046 = smul.u32 2, %s49
        %s1047 = smul.u32 2, %s49
        %v1049 = vld [vmem:[%s1037] sm:$0xf]
        %v1050 = vld [vmem:[%s1037 + $0x4] sm:$0xf]
        %v1051 = vunpack.c.l.bf16 %v1049
        %v1052 = vunpack.c.l.bf16 %v1050
        %v1053 = vld [vmem:[%s1044] sm:$0xf]
        %v1054 = vld [vmem:[%s1044 + $0x4] sm:$0xf]
        %v1055 = vld [vmem:[%s1044 + $0x8] sm:$0xf]
        %v1056 = vld [vmem:[%s1044 + $0xc] sm:$0xf]
        %v1057 = vunpack.c.l.bf16 %v1053
        %v1058 = vunpack.c.l.bf16 %v1054
        %v1059 = vunpack.c.l.bf16 %v1055
        %v1060 = vunpack.c.l.bf16 %v1056
        %v1061 = vld [vmem:[%s3] sm:$0x1]
        %v1062 = vld [vmem:[%s4] sm:$0x1]
        %vm1063 = vcmask 261120
        %v1064 = vsel %vm1063, %v1051, 0.0
        %1065 = vadd.xlane.f32.xlu0 %v1064
        %v1066 = vpop.xlane.xlu0 %1065
        %v1067 = vsel %vm1063, %v1052, 0.0
        %1068 = vadd.xlane.f32.xlu0 %v1067
        %v1069 = vpop.xlane.xlu0 %1068
        %v1070 = vrcp.pop 32.0
        %v1071 = vmul.f32 32.0, %v1070
        %v1072 = vsub.f32 1.0, %v1071
        %v1073 = vmul.f32 %v1070, %v1072
        %v1074 = vadd.f32 %v1070, %v1073
        %vm1075 = vweird.f32 %v1070
        %v1076 = vsel %vm1075, %v1070, %v1074
        %v1077 = vmul.f32 %v1066, %v1076
        %v1078 = vmul.f32 %v1069, %v1076
        %v1079 = vsub.f32 %v1051, %v1077
        %v1080 = vsub.f32 %v1052, %v1078
        %v1081 = vmul.f32 %v1079, %v1079
        %v1082 = vmul.f32 %v1080, %v1080
        %v1083 = vsel %vm1063, %v1081, 0.0
        %1084 = vadd.xlane.f32.xlu0 %v1083
        %v1085 = vpop.xlane.xlu0 %1084
        %v1086 = vsel %vm1063, %v1082, 0.0
        %1087 = vadd.xlane.f32.xlu0 %v1086
        %v1088 = vpop.xlane.xlu0 %1087
        %v1089 = vmul.f32 %v1085, %v1076
        %v1090 = vmul.f32 %v1088, %v1076
        %v1091 = vadd.f32 %v1089, 1e-05
        %v1092 = vadd.f32 %v1090, 1e-05
        %v1093 = vrsqrt.pop %v1091
        %v1094 = vmul.f32 %v1093, %v1091
        %v1095 = vmul.f32 %v1094, %v1093
        %v1096 = vmul.f32 0.5, %v1095
        %v1097 = vsub.f32 1.5, %v1096
        %v1098 = vmul.f32 %v1093, %v1097
        %vm1099 = vweird.f32 %v1091
        %vm1100 = vweird.f32 %v1093
        %vm1101 = vmor %vm1099, %vm1100
        %v1102 = vsel %vm1101, %v1093, %v1098
        %v1103 = vrsqrt.pop %v1092
        %v1104 = vmul.f32 %v1103, %v1092
        %v1105 = vmul.f32 %v1104, %v1103
        %v1106 = vmul.f32 0.5, %v1105
        %v1107 = vsub.f32 1.5, %v1106
        %v1108 = vmul.f32 %v1103, %v1107
        %vm1109 = vweird.f32 %v1092
        %vm1110 = vweird.f32 %v1103
        %vm1111 = vmor %vm1109, %vm1110
        %v1112 = vsel %vm1111, %v1103, %v1108
        %v1113 = vmul.f32 %v1079, %v1102
        %v1114 = vmul.f32 %v1080, %v1112
        %v1116 = vperm.slane %v1061, 0
        %v1118 = vmul.f32 %v1113, %v1116
        %v1119 = vmul.f32 %v1114, %v1116
        %v1121 = vperm.slane %v1062, 0
        %v1123 = vadd.f32 %v1118, %v1121
        %v1124 = vadd.f32 %v1119, %v1121
        %v1125 = vld [vmem:[%s5] sm:$0x1]
        %v1126 = vld [vmem:[%s6] sm:$0x1]
        %v1127 = vsel %vm1063, %v1057, 0.0
        %1128 = vadd.xlane.f32.xlu0 %v1127
        %v1129 = vpop.xlane.xlu0 %1128
        %v1130 = vsel %vm1063, %v1058, 0.0
        %1131 = vadd.xlane.f32.xlu0 %v1130
        %v1132 = vpop.xlane.xlu0 %1131
        %v1133 = vsel %vm1063, %v1059, 0.0
        %1134 = vadd.xlane.f32.xlu0 %v1133
        %v1135 = vpop.xlane.xlu0 %1134
        %v1136 = vsel %vm1063, %v1060, 0.0
        %1137 = vadd.xlane.f32.xlu0 %v1136
        %v1138 = vpop.xlane.xlu0 %1137
        %v1139 = vmul.f32 %v1129, %v1076
        %v1140 = vmul.f32 %v1132, %v1076
        %v1141 = vmul.f32 %v1135, %v1076
        %v1142 = vmul.f32 %v1138, %v1076
        %v1143 = vsub.f32 %v1057, %v1139
        %v1144 = vsub.f32 %v1058, %v1140
        %v1145 = vsub.f32 %v1059, %v1141
        %v1146 = vsub.f32 %v1060, %v1142
        %v1147 = vmul.f32 %v1143, %v1143
        %v1148 = vmul.f32 %v1144, %v1144
        %v1149 = vmul.f32 %v1145, %v1145
        %v1150 = vmul.f32 %v1146, %v1146
        %v1151 = vsel %vm1063, %v1147, 0.0
        %1152 = vadd.xlane.f32.xlu0 %v1151
        %v1153 = vpop.xlane.xlu0 %1152
        %v1154 = vsel %vm1063, %v1148, 0.0
        %1155 = vadd.xlane.f32.xlu0 %v1154
        %v1156 = vpop.xlane.xlu0 %1155
        %v1157 = vsel %vm1063, %v1149, 0.0
        %1158 = vadd.xlane.f32.xlu0 %v1157
        %v1159 = vpop.xlane.xlu0 %1158
        %v1160 = vsel %vm1063, %v1150, 0.0
        %1161 = vadd.xlane.f32.xlu0 %v1160
        %v1162 = vpop.xlane.xlu0 %1161
        %v1163 = vmul.f32 %v1153, %v1076
        %v1164 = vmul.f32 %v1156, %v1076
        %v1165 = vmul.f32 %v1159, %v1076
        %v1166 = vmul.f32 %v1162, %v1076
        %v1167 = vadd.f32 %v1163, 1e-05
        %v1168 = vadd.f32 %v1164, 1e-05
        %v1169 = vadd.f32 %v1165, 1e-05
        %v1170 = vadd.f32 %v1166, 1e-05
        %v1171 = vrsqrt.pop %v1167
        %v1172 = vmul.f32 %v1171, %v1167
        %v1173 = vmul.f32 %v1172, %v1171
        %v1174 = vmul.f32 0.5, %v1173
        %v1175 = vsub.f32 1.5, %v1174
        %v1176 = vmul.f32 %v1171, %v1175
        %vm1177 = vweird.f32 %v1167
        %vm1178 = vweird.f32 %v1171
        %vm1179 = vmor %vm1177, %vm1178
        %v1180 = vsel %vm1179, %v1171, %v1176
        %v1181 = vrsqrt.pop %v1168
        %v1182 = vmul.f32 %v1181, %v1168
        %v1183 = vmul.f32 %v1182, %v1181
        %v1184 = vmul.f32 0.5, %v1183
        %v1185 = vsub.f32 1.5, %v1184
        %v1186 = vmul.f32 %v1181, %v1185
        %vm1187 = vweird.f32 %v1168
        %vm1188 = vweird.f32 %v1181
        %vm1189 = vmor %vm1187, %vm1188
        %v1190 = vsel %vm1189, %v1181, %v1186
        %v1191 = vrsqrt.pop %v1169
        %v1192 = vmul.f32 %v1191, %v1169
        %v1193 = vmul.f32 %v1192, %v1191
        %v1194 = vmul.f32 0.5, %v1193
        %v1195 = vsub.f32 1.5, %v1194
        %v1196 = vmul.f32 %v1191, %v1195
        %vm1197 = vweird.f32 %v1169
        %vm1198 = vweird.f32 %v1191
        %vm1199 = vmor %vm1197, %vm1198
        %v1200 = vsel %vm1199, %v1191, %v1196
        %v1201 = vrsqrt.pop %v1170
        %v1202 = vmul.f32 %v1201, %v1170
        %v1203 = vmul.f32 %v1202, %v1201
        %v1204 = vmul.f32 0.5, %v1203
        %v1205 = vsub.f32 1.5, %v1204
        %v1206 = vmul.f32 %v1201, %v1205
        %vm1207 = vweird.f32 %v1170
        %vm1208 = vweird.f32 %v1201
        %vm1209 = vmor %vm1207, %vm1208
        %v1210 = vsel %vm1209, %v1201, %v1206
        %v1211 = vmul.f32 %v1143, %v1180
        %v1212 = vmul.f32 %v1144, %v1190
        %v1213 = vmul.f32 %v1145, %v1200
        %v1214 = vmul.f32 %v1146, %v1210
        %v1216 = vperm.slane %v1125, 0
        %v1218 = vmul.f32 %v1211, %v1216
        %v1219 = vmul.f32 %v1212, %v1216
        %v1220 = vmul.f32 %v1213, %v1216
        %v1221 = vmul.f32 %v1214, %v1216
        %v1223 = vperm.slane %v1126, 0
        %v1225 = vadd.f32 %v1218, %v1223
        %v1226 = vadd.f32 %v1219, %v1223
        %v1227 = vadd.f32 %v1220, %v1223
        %v1228 = vadd.f32 %v1221, %v1223
        %v1229 = vpack.c.bf16 %v1124, %v1123
        %v1230 = vpack.c.bf16 %v1225, %v1123
        %v1231 = vpack.c.bf16 %v1124, %v1226
        %v1232 = vpack.c.bf16 %v1228, %v1227
        %v1233 = vld [vmem:[#allocation5] sm:$0xf]
        %v1234 = vld [vmem:[#allocation5 + $0x4] sm:$0xf]
        %v1235 = vld [vmem:[#allocation5 + $0x8] sm:$0xf]
        %v1236 = vld [vmem:[#allocation5 + $0xc] sm:$0xf]
        %v1237 = vld [vmem:[%s8] sm:$0x1]
        %v1239 = vperm.slane %v1237, 0
        %v1245 = vunpack.c.l.b16 %v1233
        %v1246 = vunpack.c.l.b16 %v1234
        %v1247 = vunpack.c.l.b16 %v1235
        %v1248 = vunpack.c.l.b16 %v1236
        %v1249 = vpack.c.b16 %v1246, %v1245
        %v1250 = vpack.c.b16 %v1248, %v1247
        %v1254 = vsel %vm1063, %v1229, 0
        %1256 = vmatpush.bf16.msra.mxu0 0
        %1257 = vmatpush.bf16.msra.mxu0 0
        %1258 = vmatpush.bf16.msra.mxu0 0
        %1259 = vmatpush.bf16.msra.mxu0 0
        %1260 = vmatpush.bf16.msra.mxu0 0
        %1261 = vmatpush.bf16.msra.mxu0 0
        %1262 = vmatpush.bf16.msra.mxu0 %v1250
        %1263 = vmatpush.bf16.msra.mxu0 %v1249
        %1264 = vmatmul.bf16.gmra.mxu0 %v1254
        %v1265 = vpop.f32.mrf.mxu0
        %v1266 = vadd.f32 %v1239, %v1265
        %v1267 = vpop.f32.mrf.mxu0
        %v1268 = vadd.f32 %v1239, %v1267
        %1269 = vdwg.mxu0
        %v1270 = vmul.f32 %v1266, 0.35355338
        %v1271 = vmul.f32 %v1268, 0.35355338
        %v1272 = vld [vmem:[#allocation7] sm:$0xf]
        %v1273 = vld [vmem:[#allocation7 + $0x4] sm:$0xf]
        %v1274 = vld [vmem:[#allocation7 + $0x8] sm:$0xf]
        %v1275 = vld [vmem:[#allocation7 + $0xc] sm:$0xf]
        %v1276 = vld [vmem:[%s10] sm:$0x1]
        %v1278 = vperm.slane %v1276, 0
        %v1284 = vunpack.c.l.b16 %v1272
        %v1285 = vunpack.c.l.b16 %v1273
        %v1286 = vunpack.c.l.b16 %v1274
        %v1287 = vunpack.c.l.b16 %v1275
        %v1288 = vpack.c.b16 %v1285, %v1284
        %v1289 = vpack.c.b16 %v1287, %v1286
        %v1293 = vsel %vm1063, %v1230, 0
        %v1296 = vsel %vm1063, %v1231, 0
        %v1299 = vsel %vm1063, %v1232, 0
        %1301 = vmatpush.bf16.msra.mxu0 0
        %1302 = vmatpush.bf16.msra.mxu0 0
        %1303 = vmatpush.bf16.msra.mxu0 0
        %1304 = vmatpush.bf16.msra.mxu0 0
        %1305 = vmatpush.bf16.msra.mxu0 0
        %1306 = vmatpush.bf16.msra.mxu0 0
        %1307 = vmatpush.bf16.msra.mxu0 %v1289
        %1308 = vmatpush.bf16.msra.mxu0 %v1288
        %1309 = vmatmul.bf16.gmra.mxu0 %v1293
        %v1310 = vpop.f32.mrf.mxu0
        %v1311 = vadd.f32 %v1278, %v1310
        %v1312 = vpop.f32.mrf.mxu0
        %v1313 = vadd.f32 %v1278, %v1312
        %1314 = vmatmul.bf16.gmra.mxu0 %v1296
        %v1315 = vpop.f32.mrf.mxu0
        %v1316 = vadd.f32 %v1278, %v1315
        %v1317 = vpop.f32.mrf.mxu0
        %v1318 = vadd.f32 %v1278, %v1317
        %1319 = vmatmul.bf16.gmra.mxu0 %v1299
        %v1320 = vpop.f32.mrf.mxu0
        %v1321 = vadd.f32 %v1278, %v1320
        %v1322 = vpop.f32.mrf.mxu0
        %v1323 = vadd.f32 %v1278, %v1322
        %1324 = vdwg.mxu0
        %v1325 = vld [vmem:[#allocation8] sm:$0xf]
        %v1326 = vld [vmem:[#allocation8 + $0x4] sm:$0xf]
        %v1327 = vld [vmem:[#allocation8 + $0x8] sm:$0xf]
        %v1328 = vld [vmem:[#allocation8 + $0xc] sm:$0xf]
        %v1329 = vld [vmem:[#allocation10] sm:$0x1]
        %v1331 = vperm.slane %v1329, 0
        %v1337 = vunpack.c.l.b16 %v1325
        %v1338 = vunpack.c.l.b16 %v1326
        %v1339 = vunpack.c.l.b16 %v1327
        %v1340 = vunpack.c.l.b16 %v1328
        %v1341 = vpack.c.b16 %v1338, %v1337
        %v1342 = vpack.c.b16 %v1340, %v1339
        %1345 = vmatpush.bf16.msra.mxu0 0
        %1346 = vmatpush.bf16.msra.mxu0 0
        %1347 = vmatpush.bf16.msra.mxu0 0
        %1348 = vmatpush.bf16.msra.mxu0 0
        %1349 = vmatpush.bf16.msra.mxu0 0
        %1350 = vmatpush.bf16.msra.mxu0 0
        %1351 = vmatpush.bf16.msra.mxu0 %v1342
        %1352 = vmatpush.bf16.msra.mxu0 %v1341
        %1353 = vmatmul.bf16.gmra.mxu0 %v1293
        %v1354 = vpop.f32.mrf.mxu0
        %v1355 = vadd.f32 %v1331, %v1354
        %v1356 = vpop.f32.mrf.mxu0
        %v1357 = vadd.f32 %v1331, %v1356
        %1358 = vmatmul.bf16.gmra.mxu0 %v1296
        %v1359 = vpop.f32.mrf.mxu0
        %v1360 = vadd.f32 %v1331, %v1359
        %v1361 = vpop.f32.mrf.mxu0
        %v1362 = vadd.f32 %v1331, %v1361
        %1363 = vmatmul.bf16.gmra.mxu0 %v1299
        %v1364 = vpop.f32.mrf.mxu0
        %v1365 = vadd.f32 %v1331, %v1364
        %v1366 = vpop.f32.mrf.mxu0
        %v1367 = vadd.f32 %v1331, %v1366
        %1368 = vdwg.mxu0
        %v1369 = vpack.c.bf16 %v1270, %v1270
        %v1370 = vpack.c.bf16 %v1271, %v1271
        %v1371 = vpack.c.bf16 %v1311, %v1311
        %v1372 = vpack.c.bf16 %v1313, %v1313
        %v1373 = vpack.c.bf16 %v1316, %v1316
        %v1374 = vpack.c.bf16 %v1318, %v1318
        %v1375 = vpack.c.bf16 %v1321, %v1321
        %v1376 = vpack.c.bf16 %v1323, %v1323
        %v1377 = vpack.c.bf16 %v1355, %v1355
        %v1378 = vpack.c.bf16 %v1357, %v1357
        %v1379 = vpack.c.bf16 %v1360, %v1360
        %v1380 = vpack.c.bf16 %v1362, %v1362
        %v1381 = vpack.c.bf16 %v1365, %v1365
        %v1382 = vpack.c.bf16 %v1367, %v1367
        %v1383 = vld [vmem:[%s884] sm:$0x1]
        %v1384 = vld [vmem:[%s884 + $0x1] sm:$0x1]
        %v1387 = vperm.slane %v1383, 0
        %v1388 = vperm.slane %v1384, 0
        %v1394 = vunpack.c.l.b16 %v1371
        %v1395 = vunpack.c.l.b16 %v1372
        %v1396 = vunpack.c.l.b16 %v1373
        %v1397 = vpack.c.b16 %v1395, %v1394
        %v1398 = vpack.c.b16 %v1396, %v1396
        %vm1399 = vcmask 64512
        %v1401 = vsel %vm1399, %v1369, 0
        %v1404 = vsel %vm1399, %v1397, 0
        %v1407 = vsel %vm1399, %v1398, 0
        %1409 = vmatpush.bf16.xpose.msra.mxu0 0
        %1410 = vmatpush.bf16.xpose.msra.mxu0 0
        %1411 = vmatpush.bf16.xpose.msra.mxu0 0
        %1412 = vmatpush.bf16.xpose.msra.mxu0 0
        %1413 = vmatpush.bf16.xpose.msra.mxu0 0
        %1414 = vmatpush.bf16.xpose.msra.mxu0 0
        %1415 = vmatpush.bf16.xpose.msra.mxu0 %v1407
        %1416 = vmatpush.bf16.xpose.msra.mxu0 %v1404
        %1417 = vmatmul.bf16.gmra.mxu0 %v1401
        %v1418 = vpop.f32.mrf.mxu0
        %v1419 = vadd.f32 %v1387, %v1418
        %v1420 = vpop.f32.mrf.mxu0
        %1421 = vdwg.mxu0
        %v1425 = vunpack.c.l.b16 %v1374
        %v1426 = vunpack.c.l.b16 %v1375
        %v1427 = vunpack.c.l.b16 %v1376
        %v1428 = vpack.c.b16 %v1426, %v1425
        %v1429 = vpack.c.b16 %v1427, %v1427
        %v1431 = vsel %vm1399, %v1370, 0
        %v1434 = vsel %vm1399, %v1428, 0
        %v1437 = vsel %vm1399, %v1429, 0
        %1439 = vmatpush.bf16.xpose.msra.mxu0 0
        %1440 = vmatpush.bf16.xpose.msra.mxu0 0
        %1441 = vmatpush.bf16.xpose.msra.mxu0 0
        %1442 = vmatpush.bf16.xpose.msra.mxu0 0
        %1443 = vmatpush.bf16.xpose.msra.mxu0 0
        %1444 = vmatpush.bf16.xpose.msra.mxu0 0
        %1445 = vmatpush.bf16.xpose.msra.mxu0 %v1437
        %1446 = vmatpush.bf16.xpose.msra.mxu0 %v1434
        %1447 = vmatmul.bf16.gmra.mxu0 %v1431
        %v1448 = vpop.f32.mrf.mxu0
        %v1449 = vadd.f32 %v1388, %v1448
        %v1450 = vpop.f32.mrf.mxu0
        %1451 = vdwg.mxu0
        %vm1452 = vcmask 195584
        %v1453 = vsel %vm1452, %v1419, -inf
        %1454 = vmax.xlane.f32.xlu0 %v1453
        %v1455 = vpop.xlane.xlu0 %1454
        %v1456 = vsel %vm1452, %v1449, -inf
        %1457 = vmax.xlane.f32.xlu0 %v1456
        %v1458 = vpop.xlane.xlu0 %1457
        %v1459 = vsub.f32 %v1419, %v1455
        %v1460 = vsub.f32 %v1449, %v1458
        %v1461 = vmul.f32 %v1459, 1.442695
        %v1462 = vpow.pop %v1461
        %v1463 = vmul.f32 %v1460, 1.442695
        %v1464 = vpow.pop %v1463
        %v1465 = vsel %vm1452, %v1462, 0.0
        %1466 = vadd.xlane.f32.xlu0 %v1465
        %v1467 = vpop.xlane.xlu0 %1466
        %v1468 = vsel %vm1452, %v1464, 0.0
        %1469 = vadd.xlane.f32.xlu0 %v1468
        %v1470 = vpop.xlane.xlu0 %1469
        %v1471 = vrcp.pop %v1467
        %v1472 = vrcp.pop %v1470
        %v1473 = vpack.c.bf16 %v1462, %v1462
        %v1474 = vpack.c.bf16 %v1464, %v1464
        %v1478 = vunpack.c.l.b16 %v1377
        %v1479 = vunpack.c.l.b16 %v1378
        %v1480 = vunpack.c.l.b16 %v1379
        %v1481 = vpack.c.b16 %v1479, %v1478
        %v1482 = vpack.c.b16 %v1480, %v1480
        %v1485 = vsel %vm1452, %v1473, 0
        %vm1487 = vcmask 1043456
        %v1489 = vsel %vm1487, %v1482, 0
        %1491 = vmatpush.bf16.msra.mxu0 0
        %1492 = vmatpush.bf16.msra.mxu0 0
        %1493 = vmatpush.bf16.msra.mxu0 0
        %1494 = vmatpush.bf16.msra.mxu0 0
        %1495 = vmatpush.bf16.msra.mxu0 0
        %1496 = vmatpush.bf16.msra.mxu0 0
        %1497 = vmatpush.bf16.msra.mxu0 %v1489
        %1498 = vmatpush.bf16.msra.mxu0 %v1481
        %1499 = vmatmul.bf16.gmra.mxu0 %v1485
        %v1500 = vpop.f32.mrf.mxu0
        %v1501 = vadd.f32 0.0, %v1500
        %v1502 = vpop.f32.mrf.mxu0
        %1503 = vdwg.mxu0
        %v1507 = vunpack.c.l.b16 %v1380
        %v1508 = vunpack.c.l.b16 %v1381
        %v1509 = vunpack.c.l.b16 %v1382
        %v1510 = vpack.c.b16 %v1508, %v1507
        %v1511 = vpack.c.b16 %v1509, %v1509
        %v1514 = vsel %vm1452, %v1474, 0
        %v1517 = vsel %vm1487, %v1511, 0
        %1519 = vmatpush.bf16.msra.mxu0 0
        %1520 = vmatpush.bf16.msra.mxu0 0
        %1521 = vmatpush.bf16.msra.mxu0 0
        %1522 = vmatpush.bf16.msra.mxu0 0
        %1523 = vmatpush.bf16.msra.mxu0 0
        %1524 = vmatpush.bf16.msra.mxu0 0
        %1525 = vmatpush.bf16.msra.mxu0 %v1517
        %1526 = vmatpush.bf16.msra.mxu0 %v1510
        %1527 = vmatmul.bf16.gmra.mxu0 %v1514
        %v1528 = vpop.f32.mrf.mxu0
        %v1529 = vadd.f32 0.0, %v1528
        %v1530 = vpop.f32.mrf.mxu0
        %1531 = vdwg.mxu0
        %v1532 = vmul.f32 %v1501, %v1471
        %v1533 = vmul.f32 %v1529, %v1472
        %v1535 = vunpack.c.l.b16 %v1369
        %v1536 = vpack.c.b16 %v1535, %v1535
        %1537 = vrot.lane.b32.xlu0 %v1536, 120
        %v1538 = vpop.permute.xlu0 %1537
        %1539 = vrot.lane.b32.xlu0 %v1397, 120
        %v1540 = vpop.permute.xlu0 %1539
        %1541 = vrot.lane.b32.xlu0 %v1398, 120
        %v1542 = vpop.permute.xlu0 %1541
        %v1544 = vsel %vm1399, %v1538, 0
        %v1547 = vsel %vm1399, %v1540, 0
        %v1550 = vsel %vm1399, %v1542, 0
        %1552 = vmatpush.bf16.xpose.msra.mxu0 0
        %1553 = vmatpush.bf16.xpose.msra.mxu0 0
        %1554 = vmatpush.bf16.xpose.msra.mxu0 0
        %1555 = vmatpush.bf16.xpose.msra.mxu0 0
        %1556 = vmatpush.bf16.xpose.msra.mxu0 0
        %1557 = vmatpush.bf16.xpose.msra.mxu0 0
        %1558 = vmatpush.bf16.xpose.msra.mxu0 %v1550
        %1559 = vmatpush.bf16.xpose.msra.mxu0 %v1547
        %1560 = vmatmul.bf16.gmra.mxu0 %v1544
        %v1561 = vpop.f32.mrf.mxu0
        %v1562 = vadd.f32 %v1387, %v1561
        %v1563 = vpop.f32.mrf.mxu0
        %1564 = vdwg.mxu0
        %v1566 = vunpack.c.l.b16 %v1370
        %v1567 = vpack.c.b16 %v1566, %v1566
        %1568 = vrot.lane.b32.xlu0 %v1567, 120
        %v1569 = vpop.permute.xlu0 %1568
        %1570 = vrot.lane.b32.xlu0 %v1428, 120
        %v1571 = vpop.permute.xlu0 %1570
        %1572 = vrot.lane.b32.xlu0 %v1429, 120
        %v1573 = vpop.permute.xlu0 %1572
        %v1575 = vsel %vm1399, %v1569, 0
        %v1578 = vsel %vm1399, %v1571, 0
        %v1581 = vsel %vm1399, %v1573, 0
        %1583 = vmatpush.bf16.xpose.msra.mxu0 0
        %1584 = vmatpush.bf16.xpose.msra.mxu0 0
        %1585 = vmatpush.bf16.xpose.msra.mxu0 0
        %1586 = vmatpush.bf16.xpose.msra.mxu0 0
        %1587 = vmatpush.bf16.xpose.msra.mxu0 0
        %1588 = vmatpush.bf16.xpose.msra.mxu0 0
        %1589 = vmatpush.bf16.xpose.msra.mxu0 %v1581
        %1590 = vmatpush.bf16.xpose.msra.mxu0 %v1578
        %1591 = vmatmul.bf16.gmra.mxu0 %v1575
        %v1592 = vpop.f32.mrf.mxu0
        %v1593 = vadd.f32 %v1388, %v1592
        %v1594 = vpop.f32.mrf.mxu0
        %1595 = vdwg.mxu0
        %v1596 = vsel %vm1452, %v1562, -inf
        %1597 = vmax.xlane.f32.xlu0 %v1596
        %v1598 = vpop.xlane.xlu0 %1597
        %v1599 = vsel %vm1452, %v1593, -inf
        %1600 = vmax.xlane.f32.xlu0 %v1599
        %v1601 = vpop.xlane.xlu0 %1600
        %v1602 = vsub.f32 %v1562, %v1598
        %v1603 = vsub.f32 %v1593, %v1601
        %v1604 = vmul.f32 %v1602, 1.442695
        %v1605 = vpow.pop %v1604
        %v1606 = vmul.f32 %v1603, 1.442695
        %v1607 = vpow.pop %v1606
        %v1608 = vsel %vm1452, %v1605, 0.0
        %1609 = vadd.xlane.f32.xlu0 %v1608
        %v1610 = vpop.xlane.xlu0 %1609
        %v1611 = vsel %vm1452, %v1607, 0.0
        %1612 = vadd.xlane.f32.xlu0 %v1611
        %v1613 = vpop.xlane.xlu0 %1612
        %v1614 = vrcp.pop %v1610
        %v1615 = vrcp.pop %v1613
        %v1616 = vpack.c.bf16 %v1605, %v1605
        %v1617 = vpack.c.bf16 %v1607, %v1607
        %1618 = vrot.lane.b32.xlu0 %v1481, 120
        %v1619 = vpop.permute.xlu0 %1618
        %1620 = vrot.lane.b32.xlu0 %v1482, 120
        %v1621 = vpop.permute.xlu0 %1620
        %v1624 = vsel %vm1452, %v1616, 0
        %v1627 = vsel %vm1487, %v1621, 0
        %1629 = vmatpush.bf16.msra.mxu0 0
        %1630 = vmatpush.bf16.msra.mxu0 0
        %1631 = vmatpush.bf16.msra.mxu0 0
        %1632 = vmatpush.bf16.msra.mxu0 0
        %1633 = vmatpush.bf16.msra.mxu0 0
        %1634 = vmatpush.bf16.msra.mxu0 0
        %1635 = vmatpush.bf16.msra.mxu0 %v1627
        %1636 = vmatpush.bf16.msra.mxu0 %v1619
        %1637 = vmatmul.bf16.gmra.mxu0 %v1624
        %v1638 = vpop.f32.mrf.mxu0
        %v1639 = vadd.f32 0.0, %v1638
        %v1640 = vpop.f32.mrf.mxu0
        %1641 = vdwg.mxu0
        %1642 = vrot.lane.b32.xlu0 %v1510, 120
        %v1643 = vpop.permute.xlu0 %1642
        %1644 = vrot.lane.b32.xlu0 %v1511, 120
        %v1645 = vpop.permute.xlu0 %1644
        %v1648 = vsel %vm1452, %v1617, 0
        %v1651 = vsel %vm1487, %v1645, 0
        %1653 = vmatpush.bf16.msra.mxu0 0
        %1654 = vmatpush.bf16.msra.mxu0 0
        %1655 = vmatpush.bf16.msra.mxu0 0
        %1656 = vmatpush.bf16.msra.mxu0 0
        %1657 = vmatpush.bf16.msra.mxu0 0
        %1658 = vmatpush.bf16.msra.mxu0 0
        %1659 = vmatpush.bf16.msra.mxu0 %v1651
        %1660 = vmatpush.bf16.msra.mxu0 %v1643
        %1661 = vmatmul.bf16.gmra.mxu0 %v1648
        %v1662 = vpop.f32.mrf.mxu0
        %v1663 = vadd.f32 0.0, %v1662
        %v1664 = vpop.f32.mrf.mxu0
        %1665 = vdwg.mxu0
        %v1666 = vmul.f32 %v1639, %v1614
        %v1667 = vmul.f32 %v1663, %v1615
        %1668 = vrot.lane.b32.xlu0 %v1536, 112
        %v1669 = vpop.permute.xlu0 %1668
        %1670 = vrot.lane.b32.xlu0 %v1397, 112
        %v1671 = vpop.permute.xlu0 %1670
        %1672 = vrot.lane.b32.xlu0 %v1398, 112
        %v1673 = vpop.permute.xlu0 %1672
        %v1675 = vsel %vm1399, %v1669, 0
        %v1678 = vsel %vm1399, %v1671, 0
        %v1681 = vsel %vm1399, %v1673, 0
        %1683 = vmatpush.bf16.xpose.msra.mxu0 0
        %1684 = vmatpush.bf16.xpose.msra.mxu0 0
        %1685 = vmatpush.bf16.xpose.msra.mxu0 0
        %1686 = vmatpush.bf16.xpose.msra.mxu0 0
        %1687 = vmatpush.bf16.xpose.msra.mxu0 0
        %1688 = vmatpush.bf16.xpose.msra.mxu0 0
        %1689 = vmatpush.bf16.xpose.msra.mxu0 %v1681
        %1690 = vmatpush.bf16.xpose.msra.mxu0 %v1678
        %1691 = vmatmul.bf16.gmra.mxu0 %v1675
        %v1692 = vpop.f32.mrf.mxu0
        %v1693 = vadd.f32 %v1387, %v1692
        %v1694 = vpop.f32.mrf.mxu0
        %1695 = vdwg.mxu0
        %1696 = vrot.lane.b32.xlu0 %v1567, 112
        %v1697 = vpop.permute.xlu0 %1696
        %1698 = vrot.lane.b32.xlu0 %v1428, 112
        %v1699 = vpop.permute.xlu0 %1698
        %1700 = vrot.lane.b32.xlu0 %v1429, 112
        %v1701 = vpop.permute.xlu0 %1700
        %v1703 = vsel %vm1399, %v1697, 0
        %v1706 = vsel %vm1399, %v1699, 0
        %v1709 = vsel %vm1399, %v1701, 0
        %1711 = vmatpush.bf16.xpose.msra.mxu0 0
        %1712 = vmatpush.bf16.xpose.msra.mxu0 0
        %1713 = vmatpush.bf16.xpose.msra.mxu0 0
        %1714 = vmatpush.bf16.xpose.msra.mxu0 0
        %1715 = vmatpush.bf16.xpose.msra.mxu0 0
        %1716 = vmatpush.bf16.xpose.msra.mxu0 0
        %1717 = vmatpush.bf16.xpose.msra.mxu0 %v1709
        %1718 = vmatpush.bf16.xpose.msra.mxu0 %v1706
        %1719 = vmatmul.bf16.gmra.mxu0 %v1703
        %v1720 = vpop.f32.mrf.mxu0
        %v1721 = vadd.f32 %v1388, %v1720
        %v1722 = vpop.f32.mrf.mxu0
        %1723 = vdwg.mxu0
        %v1724 = vsel %vm1452, %v1693, -inf
        %1725 = vmax.xlane.f32.xlu0 %v1724
        %v1726 = vpop.xlane.xlu0 %1725
        %v1727 = vsel %vm1452, %v1721, -inf
        %1728 = vmax.xlane.f32.xlu0 %v1727
        %v1729 = vpop.xlane.xlu0 %1728
        %v1730 = vsub.f32 %v1693, %v1726
        %v1731 = vsub.f32 %v1721, %v1729
        %v1732 = vmul.f32 %v1730, 1.442695
        %v1733 = vpow.pop %v1732
        %v1734 = vmul.f32 %v1731, 1.442695
        %v1735 = vpow.pop %v1734
        %v1736 = vsel %vm1452, %v1733, 0.0
        %1737 = vadd.xlane.f32.xlu0 %v1736
        %v1738 = vpop.xlane.xlu0 %1737
        %v1739 = vsel %vm1452, %v1735, 0.0
        %1740 = vadd.xlane.f32.xlu0 %v1739
        %v1741 = vpop.xlane.xlu0 %1740
        %v1742 = vrcp.pop %v1738
        %v1743 = vrcp.pop %v1741
        %v1744 = vpack.c.bf16 %v1733, %v1733
        %v1745 = vpack.c.bf16 %v1735, %v1735
        %1746 = vrot.lane.b32.xlu0 %v1481, 112
        %v1747 = vpop.permute.xlu0 %1746
        %1748 = vrot.lane.b32.xlu0 %v1482, 112
        %v1749 = vpop.permute.xlu0 %1748
        %v1752 = vsel %vm1452, %v1744, 0
        %v1755 = vsel %vm1487, %v1749, 0
        %1757 = vmatpush.bf16.msra.mxu0 0
        %1758 = vmatpush.bf16.msra.mxu0 0
        %1759 = vmatpush.bf16.msra.mxu0 0
        %1760 = vmatpush.bf16.msra.mxu0 0
        %1761 = vmatpush.bf16.msra.mxu0 0
        %1762 = vmatpush.bf16.msra.mxu0 0
        %1763 = vmatpush.bf16.msra.mxu0 %v1755
        %1764 = vmatpush.bf16.msra.mxu0 %v1747
        %1765 = vmatmul.bf16.gmra.mxu0 %v1752
        %v1766 = vpop.f32.mrf.mxu0
        %v1767 = vadd.f32 0.0, %v1766
        %v1768 = vpop.f32.mrf.mxu0
        %1769 = vdwg.mxu0
        %1770 = vrot.lane.b32.xlu0 %v1510, 112
        %v1771 = vpop.permute.xlu0 %1770
        %1772 = vrot.lane.b32.xlu0 %v1511, 112
        %v1773 = vpop.permute.xlu0 %1772
        %v1776 = vsel %vm1452, %v1745, 0
        %v1779 = vsel %vm1487, %v1773, 0
        %1781 = vmatpush.bf16.msra.mxu0 0
        %1782 = vmatpush.bf16.msra.mxu0 0
        %1783 = vmatpush.bf16.msra.mxu0 0
        %1784 = vmatpush.bf16.msra.mxu0 0
        %1785 = vmatpush.bf16.msra.mxu0 0
        %1786 = vmatpush.bf16.msra.mxu0 0
        %1787 = vmatpush.bf16.msra.mxu0 %v1779
        %1788 = vmatpush.bf16.msra.mxu0 %v1771
        %1789 = vmatmul.bf16.gmra.mxu0 %v1776
        %v1790 = vpop.f32.mrf.mxu0
        %v1791 = vadd.f32 0.0, %v1790
        %v1792 = vpop.f32.mrf.mxu0
        %1793 = vdwg.mxu0
        %v1794 = vmul.f32 %v1767, %v1742
        %v1795 = vmul.f32 %v1791, %v1743
        %1796 = vrot.lane.b32.xlu0 %v1536, 104
        %v1797 = vpop.permute.xlu0 %1796
        %1798 = vrot.lane.b32.xlu0 %v1397, 104
        %v1799 = vpop.permute.xlu0 %1798
        %1800 = vrot.lane.b32.xlu0 %v1398, 104
        %v1801 = vpop.permute.xlu0 %1800
        %v1803 = vsel %vm1399, %v1797, 0
        %v1806 = vsel %vm1399, %v1799, 0
        %v1809 = vsel %vm1399, %v1801, 0
        %1811 = vmatpush.bf16.xpose.msra.mxu0 0
        %1812 = vmatpush.bf16.xpose.msra.mxu0 0
        %1813 = vmatpush.bf16.xpose.msra.mxu0 0
        %1814 = vmatpush.bf16.xpose.msra.mxu0 0
        %1815 = vmatpush.bf16.xpose.msra.mxu0 0
        %1816 = vmatpush.bf16.xpose.msra.mxu0 0
        %1817 = vmatpush.bf16.xpose.msra.mxu0 %v1809
        %1818 = vmatpush.bf16.xpose.msra.mxu0 %v1806
        %1819 = vmatmul.bf16.gmra.mxu0 %v1803
        %v1820 = vpop.f32.mrf.mxu0
        %v1821 = vadd.f32 %v1387, %v1820
        %v1822 = vpop.f32.mrf.mxu0
        %1823 = vdwg.mxu0
        %1824 = vrot.lane.b32.xlu0 %v1567, 104
        %v1825 = vpop.permute.xlu0 %1824
        %1826 = vrot.lane.b32.xlu0 %v1428, 104
        %v1827 = vpop.permute.xlu0 %1826
        %1828 = vrot.lane.b32.xlu0 %v1429, 104
        %v1829 = vpop.permute.xlu0 %1828
        %v1831 = vsel %vm1399, %v1825, 0
        %v1834 = vsel %vm1399, %v1827, 0
        %v1837 = vsel %vm1399, %v1829, 0
        %1839 = vmatpush.bf16.xpose.msra.mxu0 0
        %1840 = vmatpush.bf16.xpose.msra.mxu0 0
        %1841 = vmatpush.bf16.xpose.msra.mxu0 0
        %1842 = vmatpush.bf16.xpose.msra.mxu0 0
        %1843 = vmatpush.bf16.xpose.msra.mxu0 0
        %1844 = vmatpush.bf16.xpose.msra.mxu0 0
        %1845 = vmatpush.bf16.xpose.msra.mxu0 %v1837
        %1846 = vmatpush.bf16.xpose.msra.mxu0 %v1834
        %1847 = vmatmul.bf16.gmra.mxu0 %v1831
        %v1848 = vpop.f32.mrf.mxu0
        %v1849 = vadd.f32 %v1388, %v1848
        %v1850 = vpop.f32.mrf.mxu0
        %1851 = vdwg.mxu0
        %v1852 = vsel %vm1452, %v1821, -inf
        %1853 = vmax.xlane.f32.xlu0 %v1852
        %v1854 = vpop.xlane.xlu0 %1853
        %v1855 = vsel %vm1452, %v1849, -inf
        %1856 = vmax.xlane.f32.xlu0 %v1855
        %v1857 = vpop.xlane.xlu0 %1856
        %v1858 = vsub.f32 %v1821, %v1854
        %v1859 = vsub.f32 %v1849, %v1857
        %v1860 = vmul.f32 %v1858, 1.442695
        %v1861 = vpow.pop %v1860
        %v1862 = vmul.f32 %v1859, 1.442695
        %v1863 = vpow.pop %v1862
        %v1864 = vsel %vm1452, %v1861, 0.0
        %1865 = vadd.xlane.f32.xlu0 %v1864
        %v1866 = vpop.xlane.xlu0 %1865
        %v1867 = vsel %vm1452, %v1863, 0.0
        %1868 = vadd.xlane.f32.xlu0 %v1867
        %v1869 = vpop.xlane.xlu0 %1868
        %v1870 = vrcp.pop %v1866
        %v1871 = vrcp.pop %v1869
        %v1872 = vpack.c.bf16 %v1861, %v1861
        %v1873 = vpack.c.bf16 %v1863, %v1863
        %1874 = vrot.lane.b32.xlu0 %v1481, 104
        %v1875 = vpop.permute.xlu0 %1874
        %1876 = vrot.lane.b32.xlu0 %v1482, 104
        %v1877 = vpop.permute.xlu0 %1876
        %v1880 = vsel %vm1452, %v1872, 0
        %v1883 = vsel %vm1487, %v1877, 0
        %1885 = vmatpush.bf16.msra.mxu0 0
        %1886 = vmatpush.bf16.msra.mxu0 0
        %1887 = vmatpush.bf16.msra.mxu0 0
        %1888 = vmatpush.bf16.msra.mxu0 0
        %1889 = vmatpush.bf16.msra.mxu0 0
        %1890 = vmatpush.bf16.msra.mxu0 0
        %1891 = vmatpush.bf16.msra.mxu0 %v1883
        %1892 = vmatpush.bf16.msra.mxu0 %v1875
        %1893 = vmatmul.bf16.gmra.mxu0 %v1880
        %v1894 = vpop.f32.mrf.mxu0
        %v1895 = vadd.f32 0.0, %v1894
        %v1896 = vpop.f32.mrf.mxu0
        %1897 = vdwg.mxu0
        %1898 = vrot.lane.b32.xlu0 %v1510, 104
        %v1899 = vpop.permute.xlu0 %1898
        %1900 = vrot.lane.b32.xlu0 %v1511, 104
        %v1901 = vpop.permute.xlu0 %1900
        %v1904 = vsel %vm1452, %v1873, 0
        %v1907 = vsel %vm1487, %v1901, 0
        %1909 = vmatpush.bf16.msra.mxu0 0
        %1910 = vmatpush.bf16.msra.mxu0 0
        %1911 = vmatpush.bf16.msra.mxu0 0
        %1912 = vmatpush.bf16.msra.mxu0 0
        %1913 = vmatpush.bf16.msra.mxu0 0
        %1914 = vmatpush.bf16.msra.mxu0 0
        %1915 = vmatpush.bf16.msra.mxu0 %v1907
        %1916 = vmatpush.bf16.msra.mxu0 %v1899
        %1917 = vmatmul.bf16.gmra.mxu0 %v1904
        %v1918 = vpop.f32.mrf.mxu0
        %v1919 = vadd.f32 0.0, %v1918
        %v1920 = vpop.f32.mrf.mxu0
        %1921 = vdwg.mxu0
        %v1922 = vmul.f32 %v1895, %v1870
        %v1923 = vmul.f32 %v1919, %v1871
        %1926 = vrot.lane.b32.xlu0 %v1666, 8
        %v1927 = vpop.permute.xlu0 %1926
        %1928 = vrot.lane.b32.xlu0 %v1667, 8
        %v1929 = vpop.permute.xlu0 %1928
        %1934 = vrot.lane.b32.xlu0 %v1794, 16
        %v1935 = vpop.permute.xlu0 %1934
        %1936 = vrot.lane.b32.xlu0 %v1795, 16
        %v1937 = vpop.permute.xlu0 %1936
        %1942 = vrot.lane.b32.xlu0 %v1922, 24
        %v1943 = vpop.permute.xlu0 %1942
        %1944 = vrot.lane.b32.xlu0 %v1923, 24
        %v1945 = vpop.permute.xlu0 %1944
        %v1948 = vsel %vm1399, %v1532, %v1927
        %v1949 = vsel %vm1399, %v1533, %v1929
        %vm1950 = vcmask 130048
        %v1951 = vsel %vm1950, %v1948, %v1935
        %v1952 = vsel %vm1950, %v1949, %v1937
        %v1953 = vsel %vm1452, %v1951, %v1943
        %v1954 = vsel %vm1452, %v1952, %v1945
        %v1955 = vpack.c.bf16 %v1954, %v1953
        %v1956 = vld [vmem:[#allocation11] sm:$0xf]
        %v1957 = vld [vmem:[#allocation11 + $0x4] sm:$0xf]
        %v1958 = vld [vmem:[#allocation11 + $0x8] sm:$0xf]
        %v1959 = vld [vmem:[#allocation11 + $0xc] sm:$0xf]
        %v1960 = vld [vmem:[#allocation13] sm:$0x1]
        %v1962 = vperm.slane %v1960, 0
        %v1968 = vunpack.c.l.b16 %v1956
        %v1969 = vunpack.c.l.b16 %v1957
        %v1970 = vunpack.c.l.b16 %v1958
        %v1971 = vunpack.c.l.b16 %v1959
        %v1972 = vpack.c.b16 %v1969, %v1968
        %v1973 = vpack.c.b16 %v1971, %v1970
        %v1977 = vsel %vm1063, %v1955, 0
        %1979 = vmatpush.bf16.msra.mxu0 0
        %1980 = vmatpush.bf16.msra.mxu0 0
        %1981 = vmatpush.bf16.msra.mxu0 0
        %1982 = vmatpush.bf16.msra.mxu0 0
        %1983 = vmatpush.bf16.msra.mxu0 0
        %1984 = vmatpush.bf16.msra.mxu0 0
        %1985 = vmatpush.bf16.msra.mxu0 %v1973
        %1986 = vmatpush.bf16.msra.mxu0 %v1972
        %1987 = vmatmul.bf16.gmra.mxu0 %v1977
        %v1988 = vpop.f32.mrf.mxu0
        %v1989 = vadd.f32 %v1962, %v1988
        %v1990 = vpop.f32.mrf.mxu0
        %v1991 = vadd.f32 %v1962, %v1990
        %1992 = vdwg.mxu0
        %v1993 = vadd.f32 %v1123, %v1989
        %v1994 = vadd.f32 %v1124, %v1991
        %v1995 = vld [vmem:[#allocation14] sm:$0x1]
        %v1996 = vld [vmem:[#allocation16] sm:$0x1]
        %v1997 = vsel %vm1063, %v1993, 0.0
        %1998 = vadd.xlane.f32.xlu0 %v1997
        %v1999 = vpop.xlane.xlu0 %1998
        %v2000 = vsel %vm1063, %v1994, 0.0
        %2001 = vadd.xlane.f32.xlu0 %v2000
        %v2002 = vpop.xlane.xlu0 %2001
        %v2003 = vmul.f32 %v1999, %v1076
        %v2004 = vmul.f32 %v2002, %v1076
        %v2005 = vsub.f32 %v1993, %v2003
        %v2006 = vsub.f32 %v1994, %v2004
        %v2007 = vmul.f32 %v2005, %v2005
        %v2008 = vmul.f32 %v2006, %v2006
        %v2009 = vsel %vm1063, %v2007, 0.0
        %2010 = vadd.xlane.f32.xlu0 %v2009
        %v2011 = vpop.xlane.xlu0 %2010
        %v2012 = vsel %vm1063, %v2008, 0.0
        %2013 = vadd.xlane.f32.xlu0 %v2012
        %v2014 = vpop.xlane.xlu0 %2013
        %v2015 = vmul.f32 %v2011, %v1076
        %v2016 = vmul.f32 %v2014, %v1076
        %v2017 = vadd.f32 %v2015, 1e-05
        %v2018 = vadd.f32 %v2016, 1e-05
        %v2019 = vrsqrt.pop %v2017
        %v2020 = vmul.f32 %v2019, %v2017
        %v2021 = vmul.f32 %v2020, %v2019
        %v2022 = vmul.f32 0.5, %v2021
        %v2023 = vsub.f32 1.5, %v2022
        %v2024 = vmul.f32 %v2019, %v2023
        %vm2025 = vweird.f32 %v2017
        %vm2026 = vweird.f32 %v2019
        %vm2027 = vmor %vm2025, %vm2026
        %v2028 = vsel %vm2027, %v2019, %v2024
        %v2029 = vrsqrt.pop %v2018
        %v2030 = vmul.f32 %v2029, %v2018
        %v2031 = vmul.f32 %v2030, %v2029
        %v2032 = vmul.f32 0.5, %v2031
        %v2033 = vsub.f32 1.5, %v2032
        %v2034 = vmul.f32 %v2029, %v2033
        %vm2035 = vweird.f32 %v2018
        %vm2036 = vweird.f32 %v2029
        %vm2037 = vmor %vm2035, %vm2036
        %v2038 = vsel %vm2037, %v2029, %v2034
        %v2039 = vmul.f32 %v2005, %v2028
        %v2040 = vmul.f32 %v2006, %v2038
        %v2042 = vperm.slane %v1995, 0
        %v2044 = vmul.f32 %v2039, %v2042
        %v2045 = vmul.f32 %v2040, %v2042
        %v2047 = vperm.slane %v1996, 0
        %v2049 = vadd.f32 %v2044, %v2047
        %v2050 = vadd.f32 %v2045, %v2047
        %v2051 = vpack.c.bf16 %v2050, %v2049
        %v2052 = vld [vmem:[#allocation17] sm:$0xf]
        %v2053 = vld [vmem:[#allocation17 + $0x4] sm:$0xf]
        %v2054 = vld [vmem:[#allocation17 + $0x8] sm:$0xf]
        %v2055 = vld [vmem:[#allocation17 + $0xc] sm:$0xf]
        %v2056 = vld [vmem:[#allocation19] sm:$0x1]
        %v2058 = vperm.slane %v2056, 0
        %v2064 = vunpack.c.l.b16 %v2052
        %v2065 = vunpack.c.l.b16 %v2053
        %v2066 = vunpack.c.l.b16 %v2054
        %v2067 = vunpack.c.l.b16 %v2055
        %v2068 = vpack.c.b16 %v2065, %v2064
        %v2069 = vpack.c.b16 %v2067, %v2066
        %v2073 = vsel %vm1063, %v2051, 0
        %2075 = vmatpush.bf16.msra.mxu0 0
        %2076 = vmatpush.bf16.msra.mxu0 0
        %2077 = vmatpush.bf16.msra.mxu0 0
        %2078 = vmatpush.bf16.msra.mxu0 0
        %2079 = vmatpush.bf16.msra.mxu0 0
        %2080 = vmatpush.bf16.msra.mxu0 0
        %2081 = vmatpush.bf16.msra.mxu0 %v2069
        %2082 = vmatpush.bf16.msra.mxu0 %v2068
        %2083 = vmatmul.bf16.gmra.mxu0 %v2073
        %v2084 = vpop.f32.mrf.mxu0
        %v2085 = vadd.f32 %v2058, %v2084
        %v2086 = vpop.f32.mrf.mxu0
        %v2087 = vadd.f32 %v2058, %v2086
        %2088 = vdwg.mxu0
        %v2089 = vld [vmem:[#allocation20] sm:$0xf]
        %v2090 = vld [vmem:[#allocation20 + $0x4] sm:$0xf]
        %v2091 = vld [vmem:[#allocation20 + $0x8] sm:$0xf]
        %v2092 = vld [vmem:[#allocation20 + $0xc] sm:$0xf]
        %v2093 = vld [vmem:[#allocation22] sm:$0x1]
        %v2095 = vperm.slane %v2093, 0
        %v2101 = vunpack.c.l.b16 %v2089
        %v2102 = vunpack.c.l.b16 %v2090
        %v2103 = vunpack.c.l.b16 %v2091
        %v2104 = vunpack.c.l.b16 %v2092
        %v2105 = vpack.c.b16 %v2102, %v2101
        %v2106 = vpack.c.b16 %v2104, %v2103
        %2109 = vmatpush.bf16.msra.mxu0 0
        %2110 = vmatpush.bf16.msra.mxu0 0
        %2111 = vmatpush.bf16.msra.mxu0 0
        %2112 = vmatpush.bf16.msra.mxu0 0
        %2113 = vmatpush.bf16.msra.mxu0 0
        %2114 = vmatpush.bf16.msra.mxu0 0
        %2115 = vmatpush.bf16.msra.mxu0 %v2106
        %2116 = vmatpush.bf16.msra.mxu0 %v2105
        %2117 = vmatmul.bf16.gmra.mxu0 %v2073
        %v2118 = vpop.f32.mrf.mxu0
        %v2119 = vadd.f32 %v2095, %v2118
        %v2120 = vpop.f32.mrf.mxu0
        %v2121 = vadd.f32 %v2095, %v2120
        %2122 = vdwg.mxu0
        %v2123 = vxor.u32 %v2085, 2147483648
        %v2124 = vxor.u32 %v2087, 2147483648
        %v2125 = vmul.f32 %v2123, 1.442695
        %v2126 = vpow.pop %v2125
        %v2127 = vmul.f32 %v2124, 1.442695
        %v2128 = vpow.pop %v2127
        %v2129 = vadd.f32 %v2126, 1.0
        %v2130 = vadd.f32 %v2128, 1.0
        %v2131 = vrcp.pop %v2129
        %v2132 = vmul.f32 %v2129, %v2131
        %v2133 = vsub.f32 1.0, %v2132
        %v2134 = vmul.f32 %v2131, %v2133
        %v2135 = vadd.f32 %v2131, %v2134
        %vm2136 = vweird.f32 %v2129
        %vm2137 = vweird.f32 %v2131
        %vm2138 = vmor %vm2136, %vm2137
        %v2139 = vsel %vm2138, %v2131, %v2135
        %v2140 = vand.u32 2147483647, %v2129
        %vm2141 = vcmp.eq.f32.partialorder %v2140, 8.507059e+37
        %v2142 = vand.u32 %v2129, 2147483648
        %v2143 = vor.u32 1.1754944e-38, %v2142
        %v2144 = vsel %vm2141, %v2143, %v2139
        %v2145 = vmul.f32 1.0, %v2144
        %v2146 = vrcp.pop %v2130
        %v2147 = vmul.f32 %v2130, %v2146
        %v2148 = vsub.f32 1.0, %v2147
        %v2149 = vmul.f32 %v2146, %v2148
        %v2150 = vadd.f32 %v2146, %v2149
        %vm2151 = vweird.f32 %v2130
        %vm2152 = vweird.f32 %v2146
        %vm2153 = vmor %vm2151, %vm2152
        %v2154 = vsel %vm2153, %v2146, %v2150
        %v2155 = vand.u32 2147483647, %v2130
        %vm2156 = vcmp.eq.f32.partialorder %v2155, 8.507059e+37
        %v2157 = vand.u32 %v2130, 2147483648
        %v2158 = vor.u32 1.1754944e-38, %v2157
        %v2159 = vsel %vm2156, %v2158, %v2154
        %v2160 = vmul.f32 1.0, %v2159
        %v2161 = vmul.f32 %v2085, %v2145
        %v2162 = vmul.f32 %v2087, %v2160
        %v2163 = vmul.f32 %v2161, %v2119
        %v2164 = vmul.f32 %v2162, %v2121
        %v2165 = vld [vmem:[#allocation23] sm:$0x1]
        %v2166 = vld [vmem:[#allocation25] sm:$0x1]
        %vm2167 = vcmask 523264
        %v2168 = vsel %vm2167, %v2163, 0.0
        %2169 = vadd.xlane.f32.xlu0 %v2168
        %v2170 = vpop.xlane.xlu0 %2169
        %v2171 = vsel %vm2167, %v2164, 0.0
        %2172 = vadd.xlane.f32.xlu0 %v2171
        %v2173 = vpop.xlane.xlu0 %2172
        %v2174 = vrcp.pop 64.0
        %v2175 = vmul.f32 64.0, %v2174
        %v2176 = vsub.f32 1.0, %v2175
        %v2177 = vmul.f32 %v2174, %v2176
        %v2178 = vadd.f32 %v2174, %v2177
        %vm2179 = vweird.f32 %v2174
        %v2180 = vsel %vm2179, %v2174, %v2178
        %v2181 = vmul.f32 %v2170, %v2180
        %v2182 = vmul.f32 %v2173, %v2180
        %v2183 = vsub.f32 %v2163, %v2181
        %v2184 = vsub.f32 %v2164, %v2182
        %v2185 = vmul.f32 %v2183, %v2183
        %v2186 = vmul.f32 %v2184, %v2184
        %v2187 = vsel %vm2167, %v2185, 0.0
        %2188 = vadd.xlane.f32.xlu0 %v2187
        %v2189 = vpop.xlane.xlu0 %2188
        %v2190 = vsel %vm2167, %v2186, 0.0
        %2191 = vadd.xlane.f32.xlu0 %v2190
        %v2192 = vpop.xlane.xlu0 %2191
        %v2193 = vmul.f32 %v2189, %v2180
        %v2194 = vmul.f32 %v2192, %v2180
        %v2195 = vadd.f32 %v2193, 1e-06
        %v2196 = vadd.f32 %v2194, 1e-06
        %v2197 = vrsqrt.pop %v2195
        %v2198 = vmul.f32 %v2197, %v2195
        %v2199 = vmul.f32 %v2198, %v2197
        %v2200 = vmul.f32 0.5, %v2199
        %v2201 = vsub.f32 1.5, %v2200
        %v2202 = vmul.f32 %v2197, %v2201
        %vm2203 = vweird.f32 %v2195
        %vm2204 = vweird.f32 %v2197
        %vm2205 = vmor %vm2203, %vm2204
        %v2206 = vsel %vm2205, %v2197, %v2202
        %v2207 = vrsqrt.pop %v2196
        %v2208 = vmul.f32 %v2207, %v2196
        %v2209 = vmul.f32 %v2208, %v2207
        %v2210 = vmul.f32 0.5, %v2209
        %v2211 = vsub.f32 1.5, %v2210
        %v2212 = vmul.f32 %v2207, %v2211
        %vm2213 = vweird.f32 %v2196
        %vm2214 = vweird.f32 %v2207
        %vm2215 = vmor %vm2213, %vm2214
        %v2216 = vsel %vm2215, %v2207, %v2212
        %v2217 = vmul.f32 %v2183, %v2206
        %v2218 = vmul.f32 %v2184, %v2216
        %v2220 = vperm.slane %v2165, 0
        %v2222 = vmul.f32 %v2217, %v2220
        %v2223 = vmul.f32 %v2218, %v2220
        %v2225 = vperm.slane %v2166, 0
        %v2227 = vadd.f32 %v2222, %v2225
        %v2228 = vadd.f32 %v2223, %v2225
        %v2229 = vpack.c.bf16 %v2228, %v2227
        %v2230 = vld [vmem:[%s23] sm:$0xf]
        %v2231 = vld [vmem:[%s23 + $0x4] sm:$0xf]
        %v2232 = vld [vmem:[%s23 + $0x8] sm:$0xf]
        %v2233 = vld [vmem:[%s23 + $0xc] sm:$0xf]
        %v2234 = vld [vmem:[%s23 + $0x10] sm:$0xf]
        %v2235 = vld [vmem:[%s23 + $0x14] sm:$0xf]
        %v2236 = vld [vmem:[%s23 + $0x18] sm:$0xf]
        %v2237 = vld [vmem:[%s23 + $0x1c] sm:$0xf]
        %v2238 = vld [vmem:[%s24] sm:$0x1]
        %v2240 = vperm.slane %v2238, 0
        %v2250 = vunpack.c.l.b16 %v2230
        %v2251 = vunpack.c.l.b16 %v2231
        %v2252 = vunpack.c.l.b16 %v2232
        %v2253 = vunpack.c.l.b16 %v2233
        %v2254 = vunpack.c.l.b16 %v2234
        %v2255 = vunpack.c.l.b16 %v2235
        %v2256 = vunpack.c.l.b16 %v2236
        %v2257 = vunpack.c.l.b16 %v2237
        %v2258 = vpack.c.b16 %v2251, %v2250
        %v2259 = vpack.c.b16 %v2253, %v2252
        %v2260 = vpack.c.b16 %v2255, %v2254
        %v2261 = vpack.c.b16 %v2257, %v2256
        %v2267 = vsel %vm2167, %v2229, 0
        %2269 = vmatpush.bf16.msra.mxu0 0
        %2270 = vmatpush.bf16.msra.mxu0 0
        %2271 = vmatpush.bf16.msra.mxu0 0
        %2272 = vmatpush.bf16.msra.mxu0 0
        %2273 = vmatpush.bf16.msra.mxu0 %v2261
        %2274 = vmatpush.bf16.msra.mxu0 %v2260
        %2275 = vmatpush.bf16.msra.mxu0 %v2259
        %2276 = vmatpush.bf16.msra.mxu0 %v2258
        %2277 = vmatmul.bf16.gmra.mxu0 %v2267
        %v2278 = vpop.f32.mrf.mxu0
        %v2279 = vadd.f32 %v2240, %v2278
        %v2280 = vpop.f32.mrf.mxu0
        %v2281 = vadd.f32 %v2240, %v2280
        %2282 = vdwg.mxu0
        %v2283 = vadd.f32 %v1993, %v2279
        %v2284 = vadd.f32 %v1994, %v2281
        %2285 = vst.msk [vmem:[%s1032] sm:$0xff] %vm1063, %v2283
        %2286 = vst.msk [vmem:[%s1032 + $0x8] sm:$0xff] %vm1063, %v2284
        %s2287 = sand.u32 %s597, 1
        %s2288 = scalar_lea.sflag [#allocation4], %s2287
        %s2289 = sand.u32 %s597, 1
        %s2290 = smul.addr %s2289, 16
        %s2291 = scalar_lea.vmem [#allocation26], %s2290
        // Predicated region
        $region181: #{tpu_custom_call.1} parent=119 // pred_check
          %p2292 = pneg %p607
        $region182: #{tpu_custom_call.1} parent=119 // pred_check_branch
          %2294 = sbr.rel (%p2292) target = $region184
        $region183: #{tpu_custom_call.1} parent=119 // pred_region
          %s2295 = smul.u32 2, %s49
          %2297 = vsyncadd %s2288, 0
          %s2298 = smul.addr %s2295, 8
          %s2299 = scalar_lea.hbm %s25, %s2298
          %s2300 = sshll.u32 %s2291, 4
          %s2301 = int_to_ptr.vmem [resolvable:$true] %s2300
          %s2302 = sshll.u32 %s2299, 4
          %s2303 = int_to_ptr.hbm [resolvable:$true] %s2302
          %2308 = dma.vmem_to_hbm [thread:$0]  %s2301, 256, %s2303, %s2288, 128, 128, 8
        $region184: #{tpu_custom_call.1} parent=119 // pred_fallthru
          _
      $region120: #{tpu_custom_call.1} parent=5 // pred_fallthru
        _
      %p2309 = scmp.le.s32.totalorder 2, %s44
      // Predicated region
      $region185: #{tpu_custom_call.1} parent=5 // pred_check
        %p2310 = pneg %p2309
      $region186: #{tpu_custom_call.1} parent=5 // pred_check_branch
        %2312 = sbr.rel (%p2310) target = $region188
      $region187: #{tpu_custom_call.1} parent=5 // pred_region
        %s2313 = ssub.s32 %s44, 2
        // Predicated region
        $region189: #{tpu_custom_call.1} parent=187 // pred_check
          %p2314 = pneg %p613
        $region190: #{tpu_custom_call.1} parent=187 // pred_check_branch
          %2316 = sbr.rel (%p2314) target = $region192
        $region191: #{tpu_custom_call.1} parent=187 // pred_region
          %s2317 = sand.u32 %s598, 1
          %s2318 = scalar_lea.sflag [#allocation4], %s2317
          %s2319 = sand.u32 %s598, 1
          %s2320 = smul.addr %s2319, 16
          %s2321 = scalar_lea.vmem [#allocation26], %s2320
          %2323 = dma.done %s2318, 256
        $region192: #{tpu_custom_call.1} parent=187 // pred_fallthru
          _
      $region188: #{tpu_custom_call.1} parent=5 // pred_fallthru
        _
    $region6: #{tpu_custom_call.1} parent=1 // loop_footer
      %s48 = sadd.s32 1, %s44
    $region7: #{tpu_custom_call.1} parent=1 // loop_footer_branch
      %43 = sbr.rel target = $region3
    $region8: #{tpu_custom_call.1} parent=1 // loop_exit
      _
    %2324 = vsyncpa [#allocation3], 1
    %s2325 = scalar_lea.sflag [#allocation3], 1
    %2326 = vsyncpa %s2325, 1
    %2327 = vsyncpa [#allocation6], 1
    %2328 = vsyncpa [#allocation9], 1
    %2329 = vsyncpa [#allocation12], 1
    %2330 = vsyncpa [#allocation15], 1
    %2331 = vsyncpa [#allocation18], 1
    %2332 = vsyncpa [#allocation21], 1
    %2333 = vsyncpa [#allocation24], 1
    %2334 = vsyncpa [#allocation4], 1
    %s2335 = scalar_lea.sflag [#allocation4], 1
    %2336 = vsyncpa %s2335, 1

</llo_original>
